<compile_context>
chip_gen: v5e
topology: v5e:2x2
jax: 0.10.0
libtpu: 0.0.40
codegen_flags: <defaults>
</compile_context>

<pallas_src>
import jax
import jax.numpy as jnp
from jax.experimental import pallas as pl
from jax.experimental.pallas import tpu as pltpu

IN_FEATURES = 49
OUT_FEATURES = 2
LAYER_DIMS = [(49, 32), (32, 24), (24, 16), (16, 8), (8, 2)]

# Layer dims after fusing linear3+linear4 (linear3 has no activation).
FUSED_DIMS = [(49, 32), (32, 24), (24, 8), (8, 2)]

# Static row layout of the packed parameter slab: (w_row_start, b_row, fan_in, fan_out).
PARAM_LAYOUT = []
_r = 0
for _fi, _fo in FUSED_DIMS:
    PARAM_LAYOUT.append((_r, _r + _fi, _fi, _fo))
    _r += _fi + 1
SLAB_ROWS = ((_r + 7) // 8) * 8          # pad rows to a multiple of 8
SLAB_LANES = 128                          # lane-aligned


def strategy_net_kernel(x_ref, p_ref, o_ref):
    """x_ref: (tile, 49); p_ref: (SLAB_ROWS, 128) resident param slab; o_ref: (tile, 2)."""
    cdt = x_ref.dtype                     # compute dtype of the matmul operands
    p = p_ref[...]                        # whole slab (tiny, resident in VMEM)

    def linear(h, idx):
        w_row, b_row, fi, fo = PARAM_LAYOUT[idx]
        w = p[w_row:w_row + fi, :fo]                       # (fi, fo) in compute dtype
        b = p[b_row:b_row + 1, :fo].astype(jnp.float32)    # (1, fo) bias in f32
        return jnp.dot(h, w, preferred_element_type=jnp.float32) + b

    h = linear(x_ref[...], 0)             # linear1
    h = jnp.maximum(h, 0.0)               # relu
    h = linear(h.astype(cdt), 1)          # linear2
    h = jnp.maximum(h, 0.0)               # relu
    h = linear(h.astype(cdt), 2)          # fused linear3 + linear4
    h = jax.nn.sigmoid(h)                 # sigmoid
    out = linear(h.astype(cdt), 3)        # linear5
    o_ref[...] = out.astype(o_ref.dtype)


def pack_params(params):
    """Pack (and pre-fuse) the 5 layers into one (SLAB_ROWS, 128) f32 slab."""
    (w1, b1), (w2, b2), (w3, b3), (w4, b4), (w5, b5) = params
    w34 = w3 @ w4                          # (24, 8)
    b34 = b3 @ w4 + b4                     # (1, 8)
    fused = [(w1, b1), (w2, b2), (w34, b34), (w5, b5)]

    slab = jnp.zeros((SLAB_ROWS, SLAB_LANES), jnp.float32)
    for (W, b), (w_row, b_row, fi, fo) in zip(fused, PARAM_LAYOUT):
        assert W.shape == (fi, fo) and b.shape == (1, fo)
        slab = slab.at[w_row:w_row + fi, :fo].set(W.astype(jnp.float32))
        slab = slab.at[b_row:b_row + 1, :fo].set(b.astype(jnp.float32))
    return slab


def strategy_net_forward(x, params, *, batch_tile=256, compute_dtype=jnp.float32):
    """x: (B, 49). params: list of (W(in,out), b(1,out)) pairs in the original 5-layer form."""
    B, F = x.shape
    assert F == IN_FEATURES

    slab = pack_params(params).astype(compute_dtype)

    num_tiles = pl.cdiv(B, batch_tile)
    b_pad = num_tiles * batch_tile
    x_in = x.astype(compute_dtype)
    if b_pad != B:
        x_in = jnp.pad(x_in, ((0, b_pad - B), (0, 0)))

    out = pl.pallas_call(
        strategy_net_kernel,
        out_shape=jax.ShapeDtypeStruct((b_pad, OUT_FEATURES), jnp.float32),
        grid_spec=pltpu.PrefetchScalarGridSpec(
            num_scalar_prefetch=0,
            grid=(num_tiles,),
            in_specs=[
                pl.BlockSpec((batch_tile, F), lambda i: (i, 0)),        # streamed x tiles
                pl.BlockSpec((SLAB_ROWS, SLAB_LANES), lambda i: (0, 0)),  # resident params
            ],
            out_specs=pl.BlockSpec((batch_tile, OUT_FEATURES), lambda i: (i, 0)),
        ),
        compiler_params=pltpu.CompilerParams(
            dimension_semantics=("parallel",)),
    )(x_in, slab)
    return out[:B]


def init_params(key):
    """Deterministic init mimicking nn.Linear default (uniform +- 1/sqrt(fan_in))."""
    params = []
    for fan_in, fan_out in LAYER_DIMS:
        key, kw, kb = jax.random.split(key, 3)
        bound = 1.0 / jnp.sqrt(fan_in)
        W = jax.random.uniform(kw, (fan_in, fan_out), jnp.float32, -bound, bound)
        b = jax.random.uniform(kb, (1, fan_out), jnp.float32, -bound, bound)
        params.append((W, b))
    return params


def reference_forward(x, params):
    (w1, b1), (w2, b2), (w3, b3), (w4, b4), (w5, b5) = params
    h = jnp.maximum(x @ w1 + b1, 0.0)
    h = jnp.maximum(h @ w2 + b2, 0.0)
    h = h @ w3 + b3
    h = jax.nn.sigmoid(h @ w4 + b4)
    return h @ w5 + b5


if __name__ == "__main__":
    key = jax.random.PRNGKey(0)
    key, kx = jax.random.split(key)

    # B not a multiple of the tile -> exercises cdiv/padding; grid = 2 so both v7x TCs get work.
    B = 500
    x = jax.random.normal(kx, (B, IN_FEATURES), jnp.float32)
    params = init_params(key)
    ref = reference_forward(x, params)

    # f32 path (exact up to fp reassociation from the linear3/4 pre-fusion).
    out = jax.block_until_ready(strategy_net_forward(x, params, batch_tile=256))
    assert out.shape == (B, OUT_FEATURES)
    assert jnp.allclose(out, ref, atol=1e-4, rtol=1e-4), "f32 mismatch vs reference"

    # bf16 compute path (halves HBM bytes for x on v6e/v7x; f32 accumulation on the MXU).
    out_bf16 = jax.block_until_ready(
        strategy_net_forward(x, params, batch_tile=256, compute_dtype=jnp.bfloat16))
    assert out_bf16.shape == (B, OUT_FEATURES)
    assert jnp.allclose(out_bf16, ref, atol=1e-1, rtol=1e-1), "bf16 mismatch vs reference"

    print("KERNEL_OK")
</pallas_src>

<mosaic_0001>
module attributes {stable_mosaic.version = 11 : i64} {
  func.func @strategy_net_kernel(%arg0: i32, %arg1: memref<256x49xf32, #tpu.memory_space<vmem>>, %arg2: memref<120x128xf32, #tpu.memory_space<vmem>>, %arg3: memref<256x2xf32, #tpu.memory_space<vmem>>) attributes {dimension_semantics = [#tpu.dimension_semantics<parallel>], iteration_bounds = array<i64: 2>, scalar_prefetch = 0 : i64, scratch_operands = 0 : i64, tpu.core_type = #tpu.core_type<tc>, window_params = [{transform_indices = @transform_0, window_bounds = array<i64: 256, 49>}, {pipeline_mode = #tpu.pipeline_mode<synchronous>, transform_indices = @transform_1, window_bounds = array<i64: 120, 128>}, {transform_indices = @transform_2, window_bounds = array<i64: 256, 2>}]} {
    %c0 = arith.constant 0 : index
    %c0_0 = arith.constant 0 : index
    %0 = vector.load %arg2[%c0, %c0_0] : memref<120x128xf32, #tpu.memory_space<vmem>>, vector<120x128xf32>
    %c0_1 = arith.constant 0 : index
    %c0_2 = arith.constant 0 : index
    %1 = vector.load %arg1[%c0_1, %c0_2] : memref<256x49xf32, #tpu.memory_space<vmem>>, vector<256x49xf32>
    %2 = vector.extract_strided_slice %0 {offsets = [0, 0], sizes = [49, 32], strides = [1, 1]} : vector<120x128xf32> to vector<49x32xf32>
    %3 = vector.extract_strided_slice %0 {offsets = [49, 0], sizes = [1, 32], strides = [1, 1]} : vector<120x128xf32> to vector<1x32xf32>
    %cst = arith.constant dense<0.000000e+00> : vector<256x32xf32>
    %4 = tpu.matmul %1, %2, %cst {dimension_numbers = #tpu.dot_dimension_numbers<[1], [0], [0], [1], [0, 0, 1, 1], [], []>} : vector<256x49xf32>, vector<49x32xf32>, vector<256x32xf32> -> vector<256x32xf32>
    %5 = vector.broadcast %3 : vector<1x32xf32> to vector<256x32xf32>
    %6 = arith.addf %4, %5 : vector<256x32xf32>
    %cst_3 = arith.constant 0.000000e+00 : f32
    %7 = vector.broadcast %cst_3 : f32 to vector<256x32xf32>
    %8 = arith.maximumf %6, %7 : vector<256x32xf32>
    %9 = vector.extract_strided_slice %0 {offsets = [50, 0], sizes = [32, 24], strides = [1, 1]} : vector<120x128xf32> to vector<32x24xf32>
    %10 = vector.extract_strided_slice %0 {offsets = [82, 0], sizes = [1, 24], strides = [1, 1]} : vector<120x128xf32> to vector<1x24xf32>
    %cst_4 = arith.constant dense<0.000000e+00> : vector<256x24xf32>
    %11 = tpu.matmul %8, %9, %cst_4 {dimension_numbers = #tpu.dot_dimension_numbers<[1], [0], [0], [1], [0, 0, 1, 1], [], []>} : vector<256x32xf32>, vector<32x24xf32>, vector<256x24xf32> -> vector<256x24xf32>
    %12 = vector.broadcast %10 : vector<1x24xf32> to vector<256x24xf32>
    %13 = arith.addf %11, %12 : vector<256x24xf32>
    %cst_5 = arith.constant 0.000000e+00 : f32
    %14 = vector.broadcast %cst_5 : f32 to vector<256x24xf32>
    %15 = arith.maximumf %13, %14 : vector<256x24xf32>
    %16 = vector.extract_strided_slice %0 {offsets = [83, 0], sizes = [24, 8], strides = [1, 1]} : vector<120x128xf32> to vector<24x8xf32>
    %17 = vector.extract_strided_slice %0 {offsets = [107, 0], sizes = [1, 8], strides = [1, 1]} : vector<120x128xf32> to vector<1x8xf32>
    %cst_6 = arith.constant dense<0.000000e+00> : vector<256x8xf32>
    %18 = tpu.matmul %15, %16, %cst_6 {dimension_numbers = #tpu.dot_dimension_numbers<[1], [0], [0], [1], [0, 0, 1, 1], [], []>} : vector<256x24xf32>, vector<24x8xf32>, vector<256x8xf32> -> vector<256x8xf32>
    %19 = vector.broadcast %17 : vector<1x8xf32> to vector<256x8xf32>
    %20 = arith.addf %18, %19 : vector<256x8xf32>
    %21 = arith.negf %20 : vector<256x8xf32>
    %22 = math.exp %21 : vector<256x8xf32>
    %cst_7 = arith.constant 1.000000e+00 : f32
    %23 = vector.broadcast %cst_7 : f32 to vector<256x8xf32>
    %24 = arith.addf %23, %22 : vector<256x8xf32>
    %25 = arith.divf %23, %24 : vector<256x8xf32>
    %26 = vector.extract_strided_slice %0 {offsets = [108, 0], sizes = [8, 2], strides = [1, 1]} : vector<120x128xf32> to vector<8x2xf32>
    %27 = vector.extract_strided_slice %0 {offsets = [116, 0], sizes = [1, 2], strides = [1, 1]} : vector<120x128xf32> to vector<1x2xf32>
    %cst_8 = arith.constant dense<0.000000e+00> : vector<256x2xf32>
    %28 = tpu.matmul %25, %26, %cst_8 {dimension_numbers = #tpu.dot_dimension_numbers<[1], [0], [0], [1], [0, 0, 1, 1], [], []>} : vector<256x8xf32>, vector<8x2xf32>, vector<256x2xf32> -> vector<256x2xf32>
    %29 = vector.broadcast %27 : vector<1x2xf32> to vector<256x2xf32>
    %30 = arith.addf %28, %29 : vector<256x2xf32>
    %c0_9 = arith.constant 0 : index
    %c0_10 = arith.constant 0 : index
    %31 = vector.load %arg3[%c0_9, %c0_10] : memref<256x2xf32, #tpu.memory_space<vmem>>, vector<256x2xf32>
    tpu.vector_store %arg3[%c0_9, %c0_10], %30 {strides = array<i32>} : memref<256x2xf32, #tpu.memory_space<vmem>>, vector<256x2xf32>,
    return
  }
  func.func @transform_0(%arg0: i32) -> (i32, i32) {
    %c0_i32 = arith.constant 0 : i32
    %c0_i32_0 = arith.constant 0 : i32
    return %arg0, %c0_i32 : i32, i32
  }
  func.func @transform_1(%arg0: i32) -> (i32, i32) {
    %c0_i32 = arith.constant 0 : i32
    %c0_i32_0 = arith.constant 0 : i32
    %c0_i32_1 = arith.constant 0 : i32
    return %c0_i32, %c0_i32_0 : i32, i32
  }
  func.func @transform_2(%arg0: i32) -> (i32, i32) {
    %c0_i32 = arith.constant 0 : i32
    %c0_i32_0 = arith.constant 0 : i32
    return %arg0, %c0_i32 : i32, i32
  }
}

</mosaic_0001>

<llo_original>
// kernel: tpu_custom_call.1
$region0: #{tpu_custom_call.1}
  #allocation0 [shape = 'u32[]', space=smem, size = 0x4, offset = 0x4, fixed_abs, tag = 'smem constant byte address 0x4 - core index']
  #allocation1 [shape = 'u32[72,128]{1,0:T(1,128)}', space=vmem, size = 0x9000, scoped, tag = 'internal scratch']
  %s0 = inlined_call_operand.vmem [shape: f32[512,49], index: 0, kind: input, shape index: {}]
  %s1 = inlined_call_operand.vmem [shape: f32[120,128], index: 1, kind: input, shape index: {}]
  %s2 = inlined_call_operand.vmem [shape: f32[512,2], index: 2, kind: output, shape index: {}]
  %s3 = sld [smem:[#allocation0]]
  $region41: #{tpu_custom_call.1} parent=0
    _
  %s5 = ssub.s32 1, %s3
  %s6 = scalar_select 0, %s5, %s3
  loop: start=0, step=1, limit=4
  $region2: #{tpu_custom_call.1} parent=0 // loop_pre_header
    _
  $region3: #{tpu_custom_call.1} parent=0 // loop_header
    %s8 = sphi 0, %s12
    %p9 = scmp.ge.s32.totalorder %s8, 4
    %s18 = sphi 0, %s20
    %s21 = sphi 0, %s18
    %s22 = sphi 0, %s21
    %s38 = sphi 0, %s22
    %s42 = sphi 0, %s42
    %s44 = sphi 0, %s42
    %s45 = sphi 0, %s44
    %s59 = sphi 0, %s45
    %s65 = sphi 0, %s67
    %s68 = sphi 0, %s65
    %s69 = sphi 0, %s68
    %s85 = sphi 0, %s69
  $region4: #{tpu_custom_call.1} parent=0 // loop_header_branch
    %11 = sbr.rel (%p9) target = $region8
  $region5: #{tpu_custom_call.1} parent=0 // loop_body
    %s13 = ssub.s32 %s8, 1
    %s14 = ssub.s32 %s8, 2
    %s15 = sadd.s32 %s8, 1
    %s16 = ssub.s32 %s8, %s15
    %p17 = scmp.eq.s32.totalorder %s16, 0
    %s19 = sadd.s32 %s18, 1
    %s20 = scalar_select %p17, %s18, %s19
    %p23 = pneg %p17
    %p24 = scmp.eq.s32.totalorder %s8, 1
    %p25 = por %p23, %p24
    %p26 = scmp.ne.s32.totalorder %s18, %s21
    %p27 = scmp.eq.s32.totalorder %s8, 0
    %p28 = por %p26, %p27
    %p29 = scmp.ne.s32.totalorder %s18, %s21
    %p30 = scmp.eq.s32.totalorder %s13, 1
    %p31 = por %p29, %p30
    %p32 = scmp.ne.s32.totalorder %s21, %s22
    %p33 = scmp.eq.s32.totalorder %s13, 0
    %p34 = por %p32, %p33
    %p35 = scmp.ne.s32.totalorder %s21, %s22
    %p36 = scmp.eq.s32.totalorder %s14, 1
    %p37 = por %p35, %p36
    %p39 = scmp.ne.s32.totalorder %s22, %s38
    %p40 = scmp.eq.s32.totalorder %s14, 0
    %p41 = por %p39, %p40
    %s43 = sadd.s32 %s42, 1
    %p46 = scmp.eq.s32.totalorder %s8, 1
    %p47 = scmp.ne.s32.totalorder %s42, %s44
    %p48 = scmp.eq.s32.totalorder %s8, 0
    %p49 = por %p47, %p48
    %p50 = scmp.ne.s32.totalorder %s42, %s44
    %p51 = scmp.eq.s32.totalorder %s13, 1
    %p52 = por %p50, %p51
    %p53 = scmp.ne.s32.totalorder %s44, %s45
    %p54 = scmp.eq.s32.totalorder %s13, 0
    %p55 = por %p53, %p54
    %p56 = scmp.ne.s32.totalorder %s44, %s45
    %p57 = scmp.eq.s32.totalorder %s14, 1
    %p58 = por %p56, %p57
    %p60 = scmp.ne.s32.totalorder %s45, %s59
    %p61 = scmp.eq.s32.totalorder %s14, 0
    %p62 = por %p60, %p61
    %s63 = ssub.s32 %s8, %s15
    %p64 = scmp.eq.s32.totalorder %s63, 0
    %s66 = sadd.s32 %s65, 1
    %s67 = scalar_select %p64, %s65, %s66
    %p70 = pneg %p64
    %p71 = scmp.eq.s32.totalorder %s8, 1
    %p72 = por %p70, %p71
    %p73 = scmp.ne.s32.totalorder %s65, %s68
    %p74 = scmp.eq.s32.totalorder %s8, 0
    %p75 = por %p73, %p74
    %p76 = scmp.ne.s32.totalorder %s65, %s68
    %p77 = scmp.eq.s32.totalorder %s13, 1
    %p78 = por %p76, %p77
    %p79 = scmp.ne.s32.totalorder %s68, %s69
    %p80 = scmp.eq.s32.totalorder %s13, 0
    %p81 = por %p79, %p80
    %p82 = scmp.ne.s32.totalorder %s68, %s69
    %p83 = scmp.eq.s32.totalorder %s14, 1
    %p84 = por %p82, %p83
    %p86 = scmp.ne.s32.totalorder %s69, %s85
    %p87 = scmp.eq.s32.totalorder %s14, 0
    %p88 = por %p86, %p87
    %p89 = scmp.le.s32.totalorder 1, %s8
    %p90 = scmp.lt.s32.totalorder %s8, 3
    %p91 = pnand %p89, %p90
    %p92 = pneg %p91
    // Predicated region
    $region9: #{tpu_custom_call.1} parent=5 // pred_check
      _
    $region10: #{tpu_custom_call.1} parent=5 // pred_check_branch
      %94 = sbr.rel (%p91) target = $region12
    $region11: #{tpu_custom_call.1} parent=5 // pred_region
      %s95 = ssub.s32 %s8, 1
      // Predicated region
      $region13: #{tpu_custom_call.1} parent=11 // pred_check
        %p96 = pneg %p55
      $region14: #{tpu_custom_call.1} parent=11 // pred_check_branch
        %98 = sbr.rel (%p96) target = $region16
      $region15: #{tpu_custom_call.1} parent=11 // pred_region
        _
      $region16: #{tpu_custom_call.1} parent=11 // pred_fallthru
        _
    $region12: #{tpu_custom_call.1} parent=5 // pred_fallthru
      _
    %p99 = scmp.lt.s32.totalorder %s8, 2
    // Predicated region
    $region17: #{tpu_custom_call.1} parent=5 // pred_check
      %p100 = pneg %p99
    $region18: #{tpu_custom_call.1} parent=5 // pred_check_branch
      %102 = sbr.rel (%p100) target = $region20
    $region19: #{tpu_custom_call.1} parent=5 // pred_region
      // Predicated region
      $region21: #{tpu_custom_call.1} parent=19 // pred_check
        %p103 = pneg %p28
      $region22: #{tpu_custom_call.1} parent=19 // pred_check_branch
        %105 = sbr.rel (%p103) target = $region24
      $region23: #{tpu_custom_call.1} parent=19 // pred_region
        %s106 = smul.u32 32, %s8
        %p107 = scmp.lt.s32.totalorder %s106, 63
        %s108 = scalar_select %p107, %s106, 63
        %s109 = smul.addr %s108, 8
        %s110 = scalar_lea.vmem %s0, %s109
        %s111 = smul.u32 32, %s8
      $region24: #{tpu_custom_call.1} parent=19 // pred_fallthru
        _
    $region20: #{tpu_custom_call.1} parent=5 // pred_fallthru
      _
    %p112 = scmp.le.s32.totalorder 1, %s8
    %p113 = scmp.lt.s32.totalorder %s8, 3
    %p114 = pnand %p112, %p113
    %p115 = pneg %p114
    // Predicated region
    $region25: #{tpu_custom_call.1} parent=5 // pred_check
      _
    $region26: #{tpu_custom_call.1} parent=5 // pred_check_branch
      %117 = sbr.rel (%p114) target = $region28
    $region27: #{tpu_custom_call.1} parent=5 // pred_region
      %s118 = ssub.s32 %s8, 1
      %s119 = smul.u32 32, %s13
      %p120 = scmp.lt.s32.totalorder %s119, 63
      %s121 = scalar_select %p120, %s119, 63
      %s122 = smul.addr %s121, 8
      %s123 = scalar_lea.vmem %s0, %s122
      %p124 = pneg %p34
      %p125 = pneg %p31
      %p126 = pneg %p55
      %p127 = pneg %p52
      %p128 = pneg %p81
      %p129 = pneg %p78
      %s130 = smul.u32 32, %s13
      %p131 = scmp.lt.s32.totalorder %s130, 63
      %s132 = scalar_select %p131, %s130, 63
      %s133 = smul.addr %s132, 8
      %s134 = scalar_lea.vmem %s2, %s133
      %s135 = smul.u32 32, %s13
      %p136 = scmp.lt.s32.totalorder %s135, 63
      %s137 = scalar_select %p136, %s135, 63
      %s138 = smul.addr %s137, 8
      %s139 = scalar_lea.vmem %s0, %s138
      %s140 = smul.u32 32, %s13
      %s141 = smul.u32 32, %s13
      %p142 = scmp.lt.s32.totalorder %s141, 63
      %s143 = scalar_select %p142, %s141, 63
      %s144 = smul.addr %s143, 8
      %s145 = scalar_lea.vmem %s2, %s144
      %s146 = smul.u32 32, %s13
      %v147 = vld [vmem:[%s1] sm:$0xff]
      %v148 = vld [vmem:[%s1 + $0x8] sm:$0xff]
      %v149 = vld [vmem:[%s1 + $0x10] sm:$0xff]
      %v150 = vld [vmem:[%s1 + $0x18] sm:$0xff]
      %v151 = vld [vmem:[%s1 + $0x20] sm:$0xff]
      %v152 = vld [vmem:[%s1 + $0x28] sm:$0xff]
      %v153 = vld [vmem:[%s1 + $0x30] sm:$0xff]
      %v154 = vld [vmem:[%s1 + $0x38] sm:$0xff]
      %v155 = vld [vmem:[%s1 + $0x40] sm:$0xff]
      %v156 = vld [vmem:[%s1 + $0x48] sm:$0xff]
      %v157 = vld [vmem:[%s1 + $0x50] sm:$0xff]
      %v158 = vld [vmem:[%s1 + $0x58] sm:$0xff]
      %v159 = vld [vmem:[%s1 + $0x60] sm:$0xff]
      %v160 = vld [vmem:[%s1 + $0x68] sm:$0xff]
      %v161 = vld [vmem:[%s1 + $0x70] sm:$0xff]
      %v162 = vld [vmem:[%s139] sm:$0xff]
      %v163 = vld [vmem:[%s139 + $0x8] sm:$0xff]
      %v164 = vld [vmem:[%s139 + $0x10] sm:$0xff]
      %v165 = vld [vmem:[%s139 + $0x18] sm:$0xff]
      %v166 = vld [vmem:[%s139 + $0x20] sm:$0xff]
      %v167 = vld [vmem:[%s139 + $0x28] sm:$0xff]
      %v168 = vld [vmem:[%s139 + $0x30] sm:$0xff]
      %v169 = vld [vmem:[%s139 + $0x38] sm:$0xff]
      %v170 = vld [vmem:[%s139 + $0x40] sm:$0xff]
      %v171 = vld [vmem:[%s139 + $0x48] sm:$0xff]
      %v172 = vld [vmem:[%s139 + $0x50] sm:$0xff]
      %v173 = vld [vmem:[%s139 + $0x58] sm:$0xff]
      %v174 = vld [vmem:[%s139 + $0x60] sm:$0xff]
      %v175 = vld [vmem:[%s139 + $0x68] sm:$0xff]
      %v176 = vld [vmem:[%s139 + $0x70] sm:$0xff]
      %v177 = vld [vmem:[%s139 + $0x78] sm:$0xff]
      %v178 = vld [vmem:[%s139 + $0x80] sm:$0xff]
      %v179 = vld [vmem:[%s139 + $0x88] sm:$0xff]
      %v180 = vld [vmem:[%s139 + $0x90] sm:$0xff]
      %v181 = vld [vmem:[%s139 + $0x98] sm:$0xff]
      %v182 = vld [vmem:[%s139 + $0xa0] sm:$0xff]
      %v183 = vld [vmem:[%s139 + $0xa8] sm:$0xff]
      %v184 = vld [vmem:[%s139 + $0xb0] sm:$0xff]
      %v185 = vld [vmem:[%s139 + $0xb8] sm:$0xff]
      %v186 = vld [vmem:[%s139 + $0xc0] sm:$0xff]
      %v187 = vld [vmem:[%s139 + $0xc8] sm:$0xff]
      %v188 = vld [vmem:[%s139 + $0xd0] sm:$0xff]
      %v189 = vld [vmem:[%s139 + $0xd8] sm:$0xff]
      %v190 = vld [vmem:[%s139 + $0xe0] sm:$0xff]
      %v191 = vld [vmem:[%s139 + $0xe8] sm:$0xff]
      %v192 = vld [vmem:[%s139 + $0xf0] sm:$0xff]
      %v193 = vld [vmem:[%s139 + $0xf8] sm:$0xff]
      %v194 = vperm.slane %v153, 1
      %vm195 = vcmask 400384
      %v197 = vsel %vm195, %v162, 0
      %v200 = vsel %vm195, %v163, 0
      %v203 = vsel %vm195, %v164, 0
      %v206 = vsel %vm195, %v165, 0
      %v209 = vsel %vm195, %v166, 0
      %v212 = vsel %vm195, %v167, 0
      %v215 = vsel %vm195, %v168, 0
      %v218 = vsel %vm195, %v169, 0
      %v221 = vsel %vm195, %v170, 0
      %v224 = vsel %vm195, %v171, 0
      %v227 = vsel %vm195, %v172, 0
      %v230 = vsel %vm195, %v173, 0
      %v233 = vsel %vm195, %v174, 0
      %v236 = vsel %vm195, %v175, 0
      %v239 = vsel %vm195, %v176, 0
      %v242 = vsel %vm195, %v177, 0
      %v245 = vsel %vm195, %v178, 0
      %v248 = vsel %vm195, %v179, 0
      %v251 = vsel %vm195, %v180, 0
      %v254 = vsel %vm195, %v181, 0
      %v257 = vsel %vm195, %v182, 0
      %v260 = vsel %vm195, %v183, 0
      %v263 = vsel %vm195, %v184, 0
      %v266 = vsel %vm195, %v185, 0
      %v269 = vsel %vm195, %v186, 0
      %v272 = vsel %vm195, %v187, 0
      %v275 = vsel %vm195, %v188, 0
      %v278 = vsel %vm195, %v189, 0
      %v281 = vsel %vm195, %v190, 0
      %v284 = vsel %vm195, %v191, 0
      %v287 = vsel %vm195, %v192, 0
      %v290 = vsel %vm195, %v193, 0
      %vm292 = vcmask 1040384
      %v294 = vsel %vm292, %v153, 0
      %296 = vmatpush.msra.mxu0 0.0
      %297 = vmatpush.msra.mxu0 0.0
      %298 = vmatpush.msra.mxu0 0.0
      %299 = vmatpush.msra.mxu0 0.0
      %300 = vmatpush.msra.mxu0 0.0
      %301 = vmatpush.msra.mxu0 0.0
      %302 = vmatpush.msra.mxu0 0.0
      %303 = vmatpush.msra.mxu0 0.0
      %304 = vmatpush.msra.mxu0 0.0
      %305 = vmatpush.msra.mxu0 %v294
      %306 = vmatpush.msra.mxu0 %v152
      %307 = vmatpush.msra.mxu0 %v151
      %308 = vmatpush.msra.mxu0 %v150
      %309 = vmatpush.msra.mxu0 %v149
      %310 = vmatpush.msra.mxu0 %v148
      %311 = vmatpush.msra.mxu0 %v147
      %312 = vmatmul.f32.gmra.mxu0 %v197
      %v313 = vpop.f32.mrf.mxu0
      %v314 = vadd.f32 %v194, %v313
      %315 = vmatmul.f32.gmra.mxu0 %v200
      %v316 = vpop.f32.mrf.mxu0
      %v317 = vadd.f32 %v194, %v316
      %318 = vmatmul.f32.gmra.mxu0 %v203
      %v319 = vpop.f32.mrf.mxu0
      %v320 = vadd.f32 %v194, %v319
      %321 = vmatmul.f32.gmra.mxu0 %v206
      %v322 = vpop.f32.mrf.mxu0
      %v323 = vadd.f32 %v194, %v322
      %324 = vmatmul.f32.gmra.mxu0 %v209
      %v325 = vpop.f32.mrf.mxu0
      %v326 = vadd.f32 %v194, %v325
      %327 = vmatmul.f32.gmra.mxu0 %v212
      %v328 = vpop.f32.mrf.mxu0
      %v329 = vadd.f32 %v194, %v328
      %330 = vmatmul.f32.gmra.mxu0 %v215
      %v331 = vpop.f32.mrf.mxu0
      %v332 = vadd.f32 %v194, %v331
      %333 = vmatmul.f32.gmra.mxu0 %v218
      %v334 = vpop.f32.mrf.mxu0
      %v335 = vadd.f32 %v194, %v334
      %336 = vmatmul.f32.gmra.mxu0 %v221
      %v337 = vpop.f32.mrf.mxu0
      %v338 = vadd.f32 %v194, %v337
      %339 = vmatmul.f32.gmra.mxu0 %v224
      %v340 = vpop.f32.mrf.mxu0
      %v341 = vadd.f32 %v194, %v340
      %342 = vmatmul.f32.gmra.mxu0 %v227
      %v343 = vpop.f32.mrf.mxu0
      %v344 = vadd.f32 %v194, %v343
      %345 = vmatmul.f32.gmra.mxu0 %v230
      %v346 = vpop.f32.mrf.mxu0
      %v347 = vadd.f32 %v194, %v346
      %348 = vmatmul.f32.gmra.mxu0 %v233
      %v349 = vpop.f32.mrf.mxu0
      %v350 = vadd.f32 %v194, %v349
      %351 = vmatmul.f32.gmra.mxu0 %v236
      %v352 = vpop.f32.mrf.mxu0
      %v353 = vadd.f32 %v194, %v352
      %354 = vmatmul.f32.gmra.mxu0 %v239
      %v355 = vpop.f32.mrf.mxu0
      %v356 = vadd.f32 %v194, %v355
      %357 = vmatmul.f32.gmra.mxu0 %v242
      %v358 = vpop.f32.mrf.mxu0
      %v359 = vadd.f32 %v194, %v358
      %360 = vmatmul.f32.gmra.mxu0 %v245
      %v361 = vpop.f32.mrf.mxu0
      %v362 = vadd.f32 %v194, %v361
      %363 = vmatmul.f32.gmra.mxu0 %v248
      %v364 = vpop.f32.mrf.mxu0
      %v365 = vadd.f32 %v194, %v364
      %366 = vmatmul.f32.gmra.mxu0 %v251
      %v367 = vpop.f32.mrf.mxu0
      %v368 = vadd.f32 %v194, %v367
      %369 = vmatmul.f32.gmra.mxu0 %v254
      %v370 = vpop.f32.mrf.mxu0
      %v371 = vadd.f32 %v194, %v370
      %372 = vmatmul.f32.gmra.mxu0 %v257
      %v373 = vpop.f32.mrf.mxu0
      %v374 = vadd.f32 %v194, %v373
      %375 = vmatmul.f32.gmra.mxu0 %v260
      %v376 = vpop.f32.mrf.mxu0
      %v377 = vadd.f32 %v194, %v376
      %378 = vmatmul.f32.gmra.mxu0 %v263
      %v379 = vpop.f32.mrf.mxu0
      %v380 = vadd.f32 %v194, %v379
      %381 = vmatmul.f32.gmra.mxu0 %v266
      %v382 = vpop.f32.mrf.mxu0
      %v383 = vadd.f32 %v194, %v382
      %384 = vmatmul.f32.gmra.mxu0 %v269
      %v385 = vpop.f32.mrf.mxu0
      %v386 = vadd.f32 %v194, %v385
      %387 = vmatmul.f32.gmra.mxu0 %v272
      %v388 = vpop.f32.mrf.mxu0
      %v389 = vadd.f32 %v194, %v388
      %390 = vmatmul.f32.gmra.mxu0 %v275
      %v391 = vpop.f32.mrf.mxu0
      %v392 = vadd.f32 %v194, %v391
      %393 = vmatmul.f32.gmra.mxu0 %v278
      %v394 = vpop.f32.mrf.mxu0
      %v395 = vadd.f32 %v194, %v394
      %396 = vmatmul.f32.gmra.mxu0 %v281
      %v397 = vpop.f32.mrf.mxu0
      %v398 = vadd.f32 %v194, %v397
      %399 = vmatmul.f32.gmra.mxu0 %v284
      %v400 = vpop.f32.mrf.mxu0
      %v401 = vadd.f32 %v194, %v400
      %402 = vmatmul.f32.gmra.mxu0 %v287
      %v403 = vpop.f32.mrf.mxu0
      %v404 = vadd.f32 %v194, %v403
      %405 = vmatmul.f32.gmra.mxu0 %v290
      %v406 = vpop.f32.mrf.mxu0
      %v407 = vadd.f32 %v194, %v406
      %408 = vdwg.mxu0
      %v409 = vmax.f32 %v314, 0.0
      %v410 = vmax.f32 %v317, 0.0
      %v411 = vmax.f32 %v320, 0.0
      %v412 = vmax.f32 %v323, 0.0
      %v413 = vmax.f32 %v326, 0.0
      %v414 = vmax.f32 %v329, 0.0
      %v415 = vmax.f32 %v332, 0.0
      %v416 = vmax.f32 %v335, 0.0
      %v417 = vmax.f32 %v338, 0.0
      %v418 = vmax.f32 %v341, 0.0
      %v419 = vmax.f32 %v344, 0.0
      %v420 = vmax.f32 %v347, 0.0
      %v421 = vmax.f32 %v350, 0.0
      %v422 = vmax.f32 %v353, 0.0
      %v423 = vmax.f32 %v356, 0.0
      %v424 = vmax.f32 %v359, 0.0
      %v425 = vmax.f32 %v362, 0.0
      %v426 = vmax.f32 %v365, 0.0
      %v427 = vmax.f32 %v368, 0.0
      %v428 = vmax.f32 %v371, 0.0
      %v429 = vmax.f32 %v374, 0.0
      %v430 = vmax.f32 %v377, 0.0
      %v431 = vmax.f32 %v380, 0.0
      %v432 = vmax.f32 %v383, 0.0
      %v433 = vmax.f32 %v386, 0.0
      %v434 = vmax.f32 %v389, 0.0
      %v435 = vmax.f32 %v392, 0.0
      %v436 = vmax.f32 %v395, 0.0
      %v437 = vmax.f32 %v398, 0.0
      %v438 = vmax.f32 %v401, 0.0
      %v439 = vmax.f32 %v404, 0.0
      %v440 = vmax.f32 %v407, 0.0
      %v441 = vperm.slane %v157, 2
      %vm446 = vcmask 1045504
      %v447 = vrot.slane %v153, 2
      %v448 = vrot.slane %v154, 2
      %v449 = vsel %vm446, %v447, %v448
      %v450 = vrot.slane %v155, 2
      %v451 = vsel %vm446, %v448, %v450
      %v452 = vrot.slane %v156, 2
      %v453 = vsel %vm446, %v450, %v452
      %v454 = vrot.slane %v157, 2
      %v455 = vsel %vm446, %v452, %v454
      %vm460 = vcmask 261120
      %v462 = vsel %vm460, %v409, 0
      %v465 = vsel %vm460, %v410, 0
      %v468 = vsel %vm460, %v411, 0
      %v471 = vsel %vm460, %v412, 0
      %v474 = vsel %vm460, %v413, 0
      %v477 = vsel %vm460, %v414, 0
      %v480 = vsel %vm460, %v415, 0
      %v483 = vsel %vm460, %v416, 0
      %v486 = vsel %vm460, %v417, 0
      %v489 = vsel %vm460, %v418, 0
      %v492 = vsel %vm460, %v419, 0
      %v495 = vsel %vm460, %v420, 0
      %v498 = vsel %vm460, %v421, 0
      %v501 = vsel %vm460, %v422, 0
      %v504 = vsel %vm460, %v423, 0
      %v507 = vsel %vm460, %v424, 0
      %v510 = vsel %vm460, %v425, 0
      %v513 = vsel %vm460, %v426, 0
      %v516 = vsel %vm460, %v427, 0
      %v519 = vsel %vm460, %v428, 0
      %v522 = vsel %vm460, %v429, 0
      %v525 = vsel %vm460, %v430, 0
      %v528 = vsel %vm460, %v431, 0
      %v531 = vsel %vm460, %v432, 0
      %v534 = vsel %vm460, %v433, 0
      %v537 = vsel %vm460, %v434, 0
      %v540 = vsel %vm460, %v435, 0
      %v543 = vsel %vm460, %v436, 0
      %v546 = vsel %vm460, %v437, 0
      %v549 = vsel %vm460, %v438, 0
      %v552 = vsel %vm460, %v439, 0
      %v555 = vsel %vm460, %v440, 0
      %557 = vmatpush.msra.mxu0 0.0
      %558 = vmatpush.msra.mxu0 0.0
      %559 = vmatpush.msra.mxu0 0.0
      %560 = vmatpush.msra.mxu0 0.0
      %561 = vmatpush.msra.mxu0 0.0
      %562 = vmatpush.msra.mxu0 0.0
      %563 = vmatpush.msra.mxu0 0.0
      %564 = vmatpush.msra.mxu0 0.0
      %565 = vmatpush.msra.mxu0 0.0
      %566 = vmatpush.msra.mxu0 0.0
      %567 = vmatpush.msra.mxu0 0.0
      %568 = vmatpush.msra.mxu0 0.0
      %569 = vmatpush.msra.mxu0 %v455
      %570 = vmatpush.msra.mxu0 %v453
      %571 = vmatpush.msra.mxu0 %v451
      %572 = vmatpush.msra.mxu0 %v449
      %573 = vmatmul.f32.gmra.mxu0 %v462
      %v574 = vpop.f32.mrf.mxu0
      %v575 = vadd.f32 %v441, %v574
      %576 = vmatmul.f32.gmra.mxu0 %v465
      %v577 = vpop.f32.mrf.mxu0
      %v578 = vadd.f32 %v441, %v577
      %579 = vmatmul.f32.gmra.mxu0 %v468
      %v580 = vpop.f32.mrf.mxu0
      %v581 = vadd.f32 %v441, %v580
      %582 = vmatmul.f32.gmra.mxu0 %v471
      %v583 = vpop.f32.mrf.mxu0
      %v584 = vadd.f32 %v441, %v583
      %585 = vmatmul.f32.gmra.mxu0 %v474
      %v586 = vpop.f32.mrf.mxu0
      %v587 = vadd.f32 %v441, %v586
      %588 = vmatmul.f32.gmra.mxu0 %v477
      %v589 = vpop.f32.mrf.mxu0
      %v590 = vadd.f32 %v441, %v589
      %591 = vmatmul.f32.gmra.mxu0 %v480
      %v592 = vpop.f32.mrf.mxu0
      %v593 = vadd.f32 %v441, %v592
      %594 = vmatmul.f32.gmra.mxu0 %v483
      %v595 = vpop.f32.mrf.mxu0
      %v596 = vadd.f32 %v441, %v595
      %597 = vmatmul.f32.gmra.mxu0 %v486
      %v598 = vpop.f32.mrf.mxu0
      %v599 = vadd.f32 %v441, %v598
      %600 = vmatmul.f32.gmra.mxu0 %v489
      %v601 = vpop.f32.mrf.mxu0
      %v602 = vadd.f32 %v441, %v601
      %603 = vmatmul.f32.gmra.mxu0 %v492
      %v604 = vpop.f32.mrf.mxu0
      %v605 = vadd.f32 %v441, %v604
      %606 = vmatmul.f32.gmra.mxu0 %v495
      %v607 = vpop.f32.mrf.mxu0
      %v608 = vadd.f32 %v441, %v607
      %609 = vmatmul.f32.gmra.mxu0 %v498
      %v610 = vpop.f32.mrf.mxu0
      %v611 = vadd.f32 %v441, %v610
      %612 = vmatmul.f32.gmra.mxu0 %v501
      %v613 = vpop.f32.mrf.mxu0
      %v614 = vadd.f32 %v441, %v613
      %615 = vmatmul.f32.gmra.mxu0 %v504
      %v616 = vpop.f32.mrf.mxu0
      %v617 = vadd.f32 %v441, %v616
      %618 = vmatmul.f32.gmra.mxu0 %v507
      %v619 = vpop.f32.mrf.mxu0
      %v620 = vadd.f32 %v441, %v619
      %621 = vmatmul.f32.gmra.mxu0 %v510
      %v622 = vpop.f32.mrf.mxu0
      %v623 = vadd.f32 %v441, %v622
      %624 = vmatmul.f32.gmra.mxu0 %v513
      %v625 = vpop.f32.mrf.mxu0
      %v626 = vadd.f32 %v441, %v625
      %627 = vmatmul.f32.gmra.mxu0 %v516
      %v628 = vpop.f32.mrf.mxu0
      %v629 = vadd.f32 %v441, %v628
      %630 = vmatmul.f32.gmra.mxu0 %v519
      %v631 = vpop.f32.mrf.mxu0
      %v632 = vadd.f32 %v441, %v631
      %633 = vmatmul.f32.gmra.mxu0 %v522
      %v634 = vpop.f32.mrf.mxu0
      %v635 = vadd.f32 %v441, %v634
      %636 = vmatmul.f32.gmra.mxu0 %v525
      %v637 = vpop.f32.mrf.mxu0
      %v638 = vadd.f32 %v441, %v637
      %639 = vmatmul.f32.gmra.mxu0 %v528
      %v640 = vpop.f32.mrf.mxu0
      %v641 = vadd.f32 %v441, %v640
      %642 = vmatmul.f32.gmra.mxu0 %v531
      %v643 = vpop.f32.mrf.mxu0
      %v644 = vadd.f32 %v441, %v643
      %645 = vmatmul.f32.gmra.mxu0 %v534
      %v646 = vpop.f32.mrf.mxu0
      %v647 = vadd.f32 %v441, %v646
      %648 = vmatmul.f32.gmra.mxu0 %v537
      %v649 = vpop.f32.mrf.mxu0
      %v650 = vadd.f32 %v441, %v649
      %651 = vmatmul.f32.gmra.mxu0 %v540
      %v652 = vpop.f32.mrf.mxu0
      %v653 = vadd.f32 %v441, %v652
      %654 = vmatmul.f32.gmra.mxu0 %v543
      %v655 = vpop.f32.mrf.mxu0
      %v656 = vadd.f32 %v441, %v655
      %657 = vmatmul.f32.gmra.mxu0 %v546
      %v658 = vpop.f32.mrf.mxu0
      %v659 = vadd.f32 %v441, %v658
      %660 = vmatmul.f32.gmra.mxu0 %v549
      %v661 = vpop.f32.mrf.mxu0
      %v662 = vadd.f32 %v441, %v661
      %663 = vmatmul.f32.gmra.mxu0 %v552
      %v664 = vpop.f32.mrf.mxu0
      %v665 = vadd.f32 %v441, %v664
      %666 = vmatmul.f32.gmra.mxu0 %v555
      %v667 = vpop.f32.mrf.mxu0
      %v668 = vadd.f32 %v441, %v667
      %669 = vdwg.mxu0
      %v670 = vmax.f32 %v575, 0.0
      %v671 = vmax.f32 %v578, 0.0
      %v672 = vmax.f32 %v581, 0.0
      %v673 = vmax.f32 %v584, 0.0
      %v674 = vmax.f32 %v587, 0.0
      %v675 = vmax.f32 %v590, 0.0
      %v676 = vmax.f32 %v593, 0.0
      %v677 = vmax.f32 %v596, 0.0
      %v678 = vmax.f32 %v599, 0.0
      %v679 = vmax.f32 %v602, 0.0
      %v680 = vmax.f32 %v605, 0.0
      %v681 = vmax.f32 %v608, 0.0
      %v682 = vmax.f32 %v611, 0.0
      %v683 = vmax.f32 %v614, 0.0
      %v684 = vmax.f32 %v617, 0.0
      %v685 = vmax.f32 %v620, 0.0
      %v686 = vmax.f32 %v623, 0.0
      %v687 = vmax.f32 %v626, 0.0
      %v688 = vmax.f32 %v629, 0.0
      %v689 = vmax.f32 %v632, 0.0
      %v690 = vmax.f32 %v635, 0.0
      %v691 = vmax.f32 %v638, 0.0
      %v692 = vmax.f32 %v641, 0.0
      %v693 = vmax.f32 %v644, 0.0
      %v694 = vmax.f32 %v647, 0.0
      %v695 = vmax.f32 %v650, 0.0
      %v696 = vmax.f32 %v653, 0.0
      %v697 = vmax.f32 %v656, 0.0
      %v698 = vmax.f32 %v659, 0.0
      %v699 = vmax.f32 %v662, 0.0
      %v700 = vmax.f32 %v665, 0.0
      %v701 = vmax.f32 %v668, 0.0
      %v702 = vperm.slane %v160, 3
      %vm706 = vcmask 1044480
      %v707 = vrot.slane %v157, 3
      %v708 = vrot.slane %v158, 3
      %v709 = vsel %vm706, %v707, %v708
      %v710 = vrot.slane %v159, 3
      %v711 = vsel %vm706, %v708, %v710
      %v712 = vrot.slane %v160, 3
      %v713 = vsel %vm706, %v710, %v712
      %vm717 = vcmask 195584
      %v719 = vsel %vm717, %v670, 0
      %v722 = vsel %vm717, %v671, 0
      %v725 = vsel %vm717, %v672, 0
      %v728 = vsel %vm717, %v673, 0
      %v731 = vsel %vm717, %v674, 0
      %v734 = vsel %vm717, %v675, 0
      %v737 = vsel %vm717, %v676, 0
      %v740 = vsel %vm717, %v677, 0
      %v743 = vsel %vm717, %v678, 0
      %v746 = vsel %vm717, %v679, 0
      %v749 = vsel %vm717, %v680, 0
      %v752 = vsel %vm717, %v681, 0
      %v755 = vsel %vm717, %v682, 0
      %v758 = vsel %vm717, %v683, 0
      %v761 = vsel %vm717, %v684, 0
      %v764 = vsel %vm717, %v685, 0
      %v767 = vsel %vm717, %v686, 0
      %v770 = vsel %vm717, %v687, 0
      %v773 = vsel %vm717, %v688, 0
      %v776 = vsel %vm717, %v689, 0
      %v779 = vsel %vm717, %v690, 0
      %v782 = vsel %vm717, %v691, 0
      %v785 = vsel %vm717, %v692, 0
      %v788 = vsel %vm717, %v693, 0
      %v791 = vsel %vm717, %v694, 0
      %v794 = vsel %vm717, %v695, 0
      %v797 = vsel %vm717, %v696, 0
      %v800 = vsel %vm717, %v697, 0
      %v803 = vsel %vm717, %v698, 0
      %v806 = vsel %vm717, %v699, 0
      %v809 = vsel %vm717, %v700, 0
      %v812 = vsel %vm717, %v701, 0
      %814 = vmatpush.msra.mxu0 0.0
      %815 = vmatpush.msra.mxu0 0.0
      %816 = vmatpush.msra.mxu0 0.0
      %817 = vmatpush.msra.mxu0 0.0
      %818 = vmatpush.msra.mxu0 0.0
      %819 = vmatpush.msra.mxu0 0.0
      %820 = vmatpush.msra.mxu0 0.0
      %821 = vmatpush.msra.mxu0 0.0
      %822 = vmatpush.msra.mxu0 0.0
      %823 = vmatpush.msra.mxu0 0.0
      %824 = vmatpush.msra.mxu0 0.0
      %825 = vmatpush.msra.mxu0 0.0
      %826 = vmatpush.msra.mxu0 0.0
      %827 = vmatpush.msra.mxu0 %v713
      %828 = vmatpush.msra.mxu0 %v711
      %829 = vmatpush.msra.mxu0 %v709
      %830 = vmatmul.f32.gmra.mxu0 %v719
      %v831 = vpop.f32.mrf.mxu0
      %v832 = vadd.f32 %v702, %v831
      %833 = vmatmul.f32.gmra.mxu0 %v722
      %v834 = vpop.f32.mrf.mxu0
      %v835 = vadd.f32 %v702, %v834
      %836 = vmatmul.f32.gmra.mxu0 %v725
      %v837 = vpop.f32.mrf.mxu0
      %v838 = vadd.f32 %v702, %v837
      %839 = vmatmul.f32.gmra.mxu0 %v728
      %v840 = vpop.f32.mrf.mxu0
      %v841 = vadd.f32 %v702, %v840
      %842 = vmatmul.f32.gmra.mxu0 %v731
      %v843 = vpop.f32.mrf.mxu0
      %v844 = vadd.f32 %v702, %v843
      %845 = vmatmul.f32.gmra.mxu0 %v734
      %v846 = vpop.f32.mrf.mxu0
      %v847 = vadd.f32 %v702, %v846
      %848 = vmatmul.f32.gmra.mxu0 %v737
      %v849 = vpop.f32.mrf.mxu0
      %v850 = vadd.f32 %v702, %v849
      %851 = vmatmul.f32.gmra.mxu0 %v740
      %v852 = vpop.f32.mrf.mxu0
      %v853 = vadd.f32 %v702, %v852
      %854 = vmatmul.f32.gmra.mxu0 %v743
      %v855 = vpop.f32.mrf.mxu0
      %v856 = vadd.f32 %v702, %v855
      %857 = vmatmul.f32.gmra.mxu0 %v746
      %v858 = vpop.f32.mrf.mxu0
      %v859 = vadd.f32 %v702, %v858
      %860 = vmatmul.f32.gmra.mxu0 %v749
      %v861 = vpop.f32.mrf.mxu0
      %v862 = vadd.f32 %v702, %v861
      %863 = vmatmul.f32.gmra.mxu0 %v752
      %v864 = vpop.f32.mrf.mxu0
      %v865 = vadd.f32 %v702, %v864
      %866 = vmatmul.f32.gmra.mxu0 %v755
      %v867 = vpop.f32.mrf.mxu0
      %v868 = vadd.f32 %v702, %v867
      %869 = vmatmul.f32.gmra.mxu0 %v758
      %v870 = vpop.f32.mrf.mxu0
      %v871 = vadd.f32 %v702, %v870
      %872 = vmatmul.f32.gmra.mxu0 %v761
      %v873 = vpop.f32.mrf.mxu0
      %v874 = vadd.f32 %v702, %v873
      %875 = vmatmul.f32.gmra.mxu0 %v764
      %v876 = vpop.f32.mrf.mxu0
      %v877 = vadd.f32 %v702, %v876
      %878 = vmatmul.f32.gmra.mxu0 %v767
      %v879 = vpop.f32.mrf.mxu0
      %v880 = vadd.f32 %v702, %v879
      %881 = vmatmul.f32.gmra.mxu0 %v770
      %v882 = vpop.f32.mrf.mxu0
      %v883 = vadd.f32 %v702, %v882
      %884 = vmatmul.f32.gmra.mxu0 %v773
      %v885 = vpop.f32.mrf.mxu0
      %v886 = vadd.f32 %v702, %v885
      %887 = vmatmul.f32.gmra.mxu0 %v776
      %v888 = vpop.f32.mrf.mxu0
      %v889 = vadd.f32 %v702, %v888
      %890 = vmatmul.f32.gmra.mxu0 %v779
      %v891 = vpop.f32.mrf.mxu0
      %v892 = vadd.f32 %v702, %v891
      %893 = vmatmul.f32.gmra.mxu0 %v782
      %v894 = vpop.f32.mrf.mxu0
      %v895 = vadd.f32 %v702, %v894
      %896 = vmatmul.f32.gmra.mxu0 %v785
      %v897 = vpop.f32.mrf.mxu0
      %v898 = vadd.f32 %v702, %v897
      %899 = vmatmul.f32.gmra.mxu0 %v788
      %v900 = vpop.f32.mrf.mxu0
      %v901 = vadd.f32 %v702, %v900
      %902 = vmatmul.f32.gmra.mxu0 %v791
      %v903 = vpop.f32.mrf.mxu0
      %v904 = vadd.f32 %v702, %v903
      %905 = vmatmul.f32.gmra.mxu0 %v794
      %v906 = vpop.f32.mrf.mxu0
      %v907 = vadd.f32 %v702, %v906
      %908 = vmatmul.f32.gmra.mxu0 %v797
      %v909 = vpop.f32.mrf.mxu0
      %v910 = vadd.f32 %v702, %v909
      %911 = vmatmul.f32.gmra.mxu0 %v800
      %v912 = vpop.f32.mrf.mxu0
      %v913 = vadd.f32 %v702, %v912
      %914 = vmatmul.f32.gmra.mxu0 %v803
      %v915 = vpop.f32.mrf.mxu0
      %v916 = vadd.f32 %v702, %v915
      %917 = vmatmul.f32.gmra.mxu0 %v806
      %v918 = vpop.f32.mrf.mxu0
      %v919 = vadd.f32 %v702, %v918
      %920 = vmatmul.f32.gmra.mxu0 %v809
      %v921 = vpop.f32.mrf.mxu0
      %v922 = vadd.f32 %v702, %v921
      %923 = vmatmul.f32.gmra.mxu0 %v812
      %v924 = vpop.f32.mrf.mxu0
      %v925 = vadd.f32 %v702, %v924
      %926 = vdwg.mxu0
      %v927 = vxor.u32 %v832, 2147483648
      %v928 = vxor.u32 %v835, 2147483648
      %v929 = vxor.u32 %v838, 2147483648
      %v930 = vxor.u32 %v841, 2147483648
      %v931 = vxor.u32 %v844, 2147483648
      %v932 = vxor.u32 %v847, 2147483648
      %v933 = vxor.u32 %v850, 2147483648
      %v934 = vxor.u32 %v853, 2147483648
      %v935 = vxor.u32 %v856, 2147483648
      %v936 = vxor.u32 %v859, 2147483648
      %v937 = vxor.u32 %v862, 2147483648
      %v938 = vxor.u32 %v865, 2147483648
      %v939 = vxor.u32 %v868, 2147483648
      %v940 = vxor.u32 %v871, 2147483648
      %v941 = vxor.u32 %v874, 2147483648
      %v942 = vxor.u32 %v877, 2147483648
      %v943 = vxor.u32 %v880, 2147483648
      %v944 = vxor.u32 %v883, 2147483648
      %v945 = vxor.u32 %v886, 2147483648
      %v946 = vxor.u32 %v889, 2147483648
      %v947 = vxor.u32 %v892, 2147483648
      %v948 = vxor.u32 %v895, 2147483648
      %v949 = vxor.u32 %v898, 2147483648
      %v950 = vxor.u32 %v901, 2147483648
      %v951 = vxor.u32 %v904, 2147483648
      %v952 = vxor.u32 %v907, 2147483648
      %v953 = vxor.u32 %v910, 2147483648
      %v954 = vxor.u32 %v913, 2147483648
      %v955 = vxor.u32 %v916, 2147483648
      %v956 = vxor.u32 %v919, 2147483648
      %v957 = vxor.u32 %v922, 2147483648
      %v958 = vxor.u32 %v925, 2147483648
      %v959 = vmul.f32 %v927, 1.442695
      %v960 = vpow.pop %v959
      %v961 = vmul.f32 %v928, 1.442695
      %v962 = vpow.pop %v961
      %v963 = vmul.f32 %v929, 1.442695
      %v964 = vpow.pop %v963
      %v965 = vmul.f32 %v930, 1.442695
      %v966 = vpow.pop %v965
      %v967 = vmul.f32 %v931, 1.442695
      %v968 = vpow.pop %v967
      %v969 = vmul.f32 %v932, 1.442695
      %v970 = vpow.pop %v969
      %v971 = vmul.f32 %v933, 1.442695
      %v972 = vpow.pop %v971
      %v973 = vmul.f32 %v934, 1.442695
      %v974 = vpow.pop %v973
      %v975 = vmul.f32 %v935, 1.442695
      %v976 = vpow.pop %v975
      %v977 = vmul.f32 %v936, 1.442695
      %v978 = vpow.pop %v977
      %v979 = vmul.f32 %v937, 1.442695
      %v980 = vpow.pop %v979
      %v981 = vmul.f32 %v938, 1.442695
      %v982 = vpow.pop %v981
      %v983 = vmul.f32 %v939, 1.442695
      %v984 = vpow.pop %v983
      %v985 = vmul.f32 %v940, 1.442695
      %v986 = vpow.pop %v985
      %v987 = vmul.f32 %v941, 1.442695
      %v988 = vpow.pop %v987
      %v989 = vmul.f32 %v942, 1.442695
      %v990 = vpow.pop %v989
      %v991 = vmul.f32 %v943, 1.442695
      %v992 = vpow.pop %v991
      %v993 = vmul.f32 %v944, 1.442695
      %v994 = vpow.pop %v993
      %v995 = vmul.f32 %v945, 1.442695
      %v996 = vpow.pop %v995
      %v997 = vmul.f32 %v946, 1.442695
      %v998 = vpow.pop %v997
      %v999 = vmul.f32 %v947, 1.442695
      %v1000 = vpow.pop %v999
      %v1001 = vmul.f32 %v948, 1.442695
      %v1002 = vpow.pop %v1001
      %v1003 = vmul.f32 %v949, 1.442695
      %v1004 = vpow.pop %v1003
      %v1005 = vmul.f32 %v950, 1.442695
      %v1006 = vpow.pop %v1005
      %v1007 = vmul.f32 %v951, 1.442695
      %v1008 = vpow.pop %v1007
      %v1009 = vmul.f32 %v952, 1.442695
      %v1010 = vpow.pop %v1009
      %v1011 = vmul.f32 %v953, 1.442695
      %v1012 = vpow.pop %v1011
      %v1013 = vmul.f32 %v954, 1.442695
      %v1014 = vpow.pop %v1013
      %v1015 = vmul.f32 %v955, 1.442695
      %v1016 = vpow.pop %v1015
      %v1017 = vmul.f32 %v956, 1.442695
      %v1018 = vpow.pop %v1017
      %v1019 = vmul.f32 %v957, 1.442695
      %v1020 = vpow.pop %v1019
      %v1021 = vmul.f32 %v958, 1.442695
      %v1022 = vpow.pop %v1021
      %v1023 = vadd.f32 %v960, 1.0
      %v1024 = vadd.f32 %v962, 1.0
      %v1025 = vadd.f32 %v964, 1.0
      %v1026 = vadd.f32 %v966, 1.0
      %v1027 = vadd.f32 %v968, 1.0
      %v1028 = vadd.f32 %v970, 1.0
      %v1029 = vadd.f32 %v972, 1.0
      %v1030 = vadd.f32 %v974, 1.0
      %v1031 = vadd.f32 %v976, 1.0
      %v1032 = vadd.f32 %v978, 1.0
      %v1033 = vadd.f32 %v980, 1.0
      %v1034 = vadd.f32 %v982, 1.0
      %v1035 = vadd.f32 %v984, 1.0
      %v1036 = vadd.f32 %v986, 1.0
      %v1037 = vadd.f32 %v988, 1.0
      %v1038 = vadd.f32 %v990, 1.0
      %v1039 = vadd.f32 %v992, 1.0
      %v1040 = vadd.f32 %v994, 1.0
      %v1041 = vadd.f32 %v996, 1.0
      %v1042 = vadd.f32 %v998, 1.0
      %v1043 = vadd.f32 %v1000, 1.0
      %v1044 = vadd.f32 %v1002, 1.0
      %v1045 = vadd.f32 %v1004, 1.0
      %v1046 = vadd.f32 %v1006, 1.0
      %v1047 = vadd.f32 %v1008, 1.0
      %v1048 = vadd.f32 %v1010, 1.0
      %v1049 = vadd.f32 %v1012, 1.0
      %v1050 = vadd.f32 %v1014, 1.0
      %v1051 = vadd.f32 %v1016, 1.0
      %v1052 = vadd.f32 %v1018, 1.0
      %v1053 = vadd.f32 %v1020, 1.0
      %v1054 = vadd.f32 %v1022, 1.0
      %v1055 = vrcp.pop %v1023
      %v1056 = vmul.f32 %v1023, %v1055
      %v1057 = vsub.f32 1.0, %v1056
      %v1058 = vmul.f32 %v1055, %v1057
      %v1059 = vadd.f32 %v1055, %v1058
      %vm1060 = vweird.f32 %v1023
      %vm1061 = vweird.f32 %v1055
      %vm1062 = vmor %vm1060, %vm1061
      %v1063 = vsel %vm1062, %v1055, %v1059
      %v1064 = vand.u32 2147483647, %v1023
      %vm1065 = vcmp.eq.f32.partialorder %v1064, 8.507059e+37
      %v1066 = vand.u32 %v1023, 2147483648
      %v1067 = vor.u32 1.1754944e-38, %v1066
      %v1068 = vsel %vm1065, %v1067, %v1063
      %v1069 = vmul.f32 1.0, %v1068
      %v1070 = vrcp.pop %v1024
      %v1071 = vmul.f32 %v1024, %v1070
      %v1072 = vsub.f32 1.0, %v1071
      %v1073 = vmul.f32 %v1070, %v1072
      %v1074 = vadd.f32 %v1070, %v1073
      %vm1075 = vweird.f32 %v1024
      %vm1076 = vweird.f32 %v1070
      %vm1077 = vmor %vm1075, %vm1076
      %v1078 = vsel %vm1077, %v1070, %v1074
      %v1079 = vand.u32 2147483647, %v1024
      %vm1080 = vcmp.eq.f32.partialorder %v1079, 8.507059e+37
      %v1081 = vand.u32 %v1024, 2147483648
      %v1082 = vor.u32 1.1754944e-38, %v1081
      %v1083 = vsel %vm1080, %v1082, %v1078
      %v1084 = vmul.f32 1.0, %v1083
      %v1085 = vrcp.pop %v1025
      %v1086 = vmul.f32 %v1025, %v1085
      %v1087 = vsub.f32 1.0, %v1086
      %v1088 = vmul.f32 %v1085, %v1087
      %v1089 = vadd.f32 %v1085, %v1088
      %vm1090 = vweird.f32 %v1025
      %vm1091 = vweird.f32 %v1085
      %vm1092 = vmor %vm1090, %vm1091
      %v1093 = vsel %vm1092, %v1085, %v1089
      %v1094 = vand.u32 2147483647, %v1025
      %vm1095 = vcmp.eq.f32.partialorder %v1094, 8.507059e+37
      %v1096 = vand.u32 %v1025, 2147483648
      %v1097 = vor.u32 1.1754944e-38, %v1096
      %v1098 = vsel %vm1095, %v1097, %v1093
      %v1099 = vmul.f32 1.0, %v1098
      %v1100 = vrcp.pop %v1026
      %v1101 = vmul.f32 %v1026, %v1100
      %v1102 = vsub.f32 1.0, %v1101
      %v1103 = vmul.f32 %v1100, %v1102
      %v1104 = vadd.f32 %v1100, %v1103
      %vm1105 = vweird.f32 %v1026
      %vm1106 = vweird.f32 %v1100
      %vm1107 = vmor %vm1105, %vm1106
      %v1108 = vsel %vm1107, %v1100, %v1104
      %v1109 = vand.u32 2147483647, %v1026
      %vm1110 = vcmp.eq.f32.partialorder %v1109, 8.507059e+37
      %v1111 = vand.u32 %v1026, 2147483648
      %v1112 = vor.u32 1.1754944e-38, %v1111
      %v1113 = vsel %vm1110, %v1112, %v1108
      %v1114 = vmul.f32 1.0, %v1113
      %v1115 = vrcp.pop %v1027
      %v1116 = vmul.f32 %v1027, %v1115
      %v1117 = vsub.f32 1.0, %v1116
      %v1118 = vmul.f32 %v1115, %v1117
      %v1119 = vadd.f32 %v1115, %v1118
      %vm1120 = vweird.f32 %v1027
      %vm1121 = vweird.f32 %v1115
      %vm1122 = vmor %vm1120, %vm1121
      %v1123 = vsel %vm1122, %v1115, %v1119
      %v1124 = vand.u32 2147483647, %v1027
      %vm1125 = vcmp.eq.f32.partialorder %v1124, 8.507059e+37
      %v1126 = vand.u32 %v1027, 2147483648
      %v1127 = vor.u32 1.1754944e-38, %v1126
      %v1128 = vsel %vm1125, %v1127, %v1123
      %v1129 = vmul.f32 1.0, %v1128
      %v1130 = vrcp.pop %v1028
      %v1131 = vmul.f32 %v1028, %v1130
      %v1132 = vsub.f32 1.0, %v1131
      %v1133 = vmul.f32 %v1130, %v1132
      %v1134 = vadd.f32 %v1130, %v1133
      %vm1135 = vweird.f32 %v1028
      %vm1136 = vweird.f32 %v1130
      %vm1137 = vmor %vm1135, %vm1136
      %v1138 = vsel %vm1137, %v1130, %v1134
      %v1139 = vand.u32 2147483647, %v1028
      %vm1140 = vcmp.eq.f32.partialorder %v1139, 8.507059e+37
      %v1141 = vand.u32 %v1028, 2147483648
      %v1142 = vor.u32 1.1754944e-38, %v1141
      %v1143 = vsel %vm1140, %v1142, %v1138
      %v1144 = vmul.f32 1.0, %v1143
      %v1145 = vrcp.pop %v1029
      %v1146 = vmul.f32 %v1029, %v1145
      %v1147 = vsub.f32 1.0, %v1146
      %v1148 = vmul.f32 %v1145, %v1147
      %v1149 = vadd.f32 %v1145, %v1148
      %vm1150 = vweird.f32 %v1029
      %vm1151 = vweird.f32 %v1145
      %vm1152 = vmor %vm1150, %vm1151
      %v1153 = vsel %vm1152, %v1145, %v1149
      %v1154 = vand.u32 2147483647, %v1029
      %vm1155 = vcmp.eq.f32.partialorder %v1154, 8.507059e+37
      %v1156 = vand.u32 %v1029, 2147483648
      %v1157 = vor.u32 1.1754944e-38, %v1156
      %v1158 = vsel %vm1155, %v1157, %v1153
      %v1159 = vmul.f32 1.0, %v1158
      %v1160 = vrcp.pop %v1030
      %v1161 = vmul.f32 %v1030, %v1160
      %v1162 = vsub.f32 1.0, %v1161
      %v1163 = vmul.f32 %v1160, %v1162
      %v1164 = vadd.f32 %v1160, %v1163
      %vm1165 = vweird.f32 %v1030
      %vm1166 = vweird.f32 %v1160
      %vm1167 = vmor %vm1165, %vm1166
      %v1168 = vsel %vm1167, %v1160, %v1164
      %v1169 = vand.u32 2147483647, %v1030
      %vm1170 = vcmp.eq.f32.partialorder %v1169, 8.507059e+37
      %v1171 = vand.u32 %v1030, 2147483648
      %v1172 = vor.u32 1.1754944e-38, %v1171
      %v1173 = vsel %vm1170, %v1172, %v1168
      %v1174 = vmul.f32 1.0, %v1173
      %v1175 = vrcp.pop %v1031
      %v1176 = vmul.f32 %v1031, %v1175
      %v1177 = vsub.f32 1.0, %v1176
      %v1178 = vmul.f32 %v1175, %v1177
      %v1179 = vadd.f32 %v1175, %v1178
      %vm1180 = vweird.f32 %v1031
      %vm1181 = vweird.f32 %v1175
      %vm1182 = vmor %vm1180, %vm1181
      %v1183 = vsel %vm1182, %v1175, %v1179
      %v1184 = vand.u32 2147483647, %v1031
      %vm1185 = vcmp.eq.f32.partialorder %v1184, 8.507059e+37
      %v1186 = vand.u32 %v1031, 2147483648
      %v1187 = vor.u32 1.1754944e-38, %v1186
      %v1188 = vsel %vm1185, %v1187, %v1183
      %v1189 = vmul.f32 1.0, %v1188
      %v1190 = vrcp.pop %v1032
      %v1191 = vmul.f32 %v1032, %v1190
      %v1192 = vsub.f32 1.0, %v1191
      %v1193 = vmul.f32 %v1190, %v1192
      %v1194 = vadd.f32 %v1190, %v1193
      %vm1195 = vweird.f32 %v1032
      %vm1196 = vweird.f32 %v1190
      %vm1197 = vmor %vm1195, %vm1196
      %v1198 = vsel %vm1197, %v1190, %v1194
      %v1199 = vand.u32 2147483647, %v1032
      %vm1200 = vcmp.eq.f32.partialorder %v1199, 8.507059e+37
      %v1201 = vand.u32 %v1032, 2147483648
      %v1202 = vor.u32 1.1754944e-38, %v1201
      %v1203 = vsel %vm1200, %v1202, %v1198
      %v1204 = vmul.f32 1.0, %v1203
      %v1205 = vrcp.pop %v1033
      %v1206 = vmul.f32 %v1033, %v1205
      %v1207 = vsub.f32 1.0, %v1206
      %v1208 = vmul.f32 %v1205, %v1207
      %v1209 = vadd.f32 %v1205, %v1208
      %vm1210 = vweird.f32 %v1033
      %vm1211 = vweird.f32 %v1205
      %vm1212 = vmor %vm1210, %vm1211
      %v1213 = vsel %vm1212, %v1205, %v1209
      %v1214 = vand.u32 2147483647, %v1033
      %vm1215 = vcmp.eq.f32.partialorder %v1214, 8.507059e+37
      %v1216 = vand.u32 %v1033, 2147483648
      %v1217 = vor.u32 1.1754944e-38, %v1216
      %v1218 = vsel %vm1215, %v1217, %v1213
      %v1219 = vmul.f32 1.0, %v1218
      %v1220 = vrcp.pop %v1034
      %v1221 = vmul.f32 %v1034, %v1220
      %v1222 = vsub.f32 1.0, %v1221
      %v1223 = vmul.f32 %v1220, %v1222
      %v1224 = vadd.f32 %v1220, %v1223
      %vm1225 = vweird.f32 %v1034
      %vm1226 = vweird.f32 %v1220
      %vm1227 = vmor %vm1225, %vm1226
      %v1228 = vsel %vm1227, %v1220, %v1224
      %v1229 = vand.u32 2147483647, %v1034
      %vm1230 = vcmp.eq.f32.partialorder %v1229, 8.507059e+37
      %v1231 = vand.u32 %v1034, 2147483648
      %v1232 = vor.u32 1.1754944e-38, %v1231
      %v1233 = vsel %vm1230, %v1232, %v1228
      %v1234 = vmul.f32 1.0, %v1233
      %v1235 = vrcp.pop %v1035
      %v1236 = vmul.f32 %v1035, %v1235
      %v1237 = vsub.f32 1.0, %v1236
      %v1238 = vmul.f32 %v1235, %v1237
      %v1239 = vadd.f32 %v1235, %v1238
      %vm1240 = vweird.f32 %v1035
      %vm1241 = vweird.f32 %v1235
      %vm1242 = vmor %vm1240, %vm1241
      %v1243 = vsel %vm1242, %v1235, %v1239
      %v1244 = vand.u32 2147483647, %v1035
      %vm1245 = vcmp.eq.f32.partialorder %v1244, 8.507059e+37
      %v1246 = vand.u32 %v1035, 2147483648
      %v1247 = vor.u32 1.1754944e-38, %v1246
      %v1248 = vsel %vm1245, %v1247, %v1243
      %v1249 = vmul.f32 1.0, %v1248
      %v1250 = vrcp.pop %v1036
      %v1251 = vmul.f32 %v1036, %v1250
      %v1252 = vsub.f32 1.0, %v1251
      %v1253 = vmul.f32 %v1250, %v1252
      %v1254 = vadd.f32 %v1250, %v1253
      %vm1255 = vweird.f32 %v1036
      %vm1256 = vweird.f32 %v1250
      %vm1257 = vmor %vm1255, %vm1256
      %v1258 = vsel %vm1257, %v1250, %v1254
      %v1259 = vand.u32 2147483647, %v1036
      %vm1260 = vcmp.eq.f32.partialorder %v1259, 8.507059e+37
      %v1261 = vand.u32 %v1036, 2147483648
      %v1262 = vor.u32 1.1754944e-38, %v1261
      %v1263 = vsel %vm1260, %v1262, %v1258
      %v1264 = vmul.f32 1.0, %v1263
      %v1265 = vrcp.pop %v1037
      %v1266 = vmul.f32 %v1037, %v1265
      %v1267 = vsub.f32 1.0, %v1266
      %v1268 = vmul.f32 %v1265, %v1267
      %v1269 = vadd.f32 %v1265, %v1268
      %vm1270 = vweird.f32 %v1037
      %vm1271 = vweird.f32 %v1265
      %vm1272 = vmor %vm1270, %vm1271
      %v1273 = vsel %vm1272, %v1265, %v1269
      %v1274 = vand.u32 2147483647, %v1037
      %vm1275 = vcmp.eq.f32.partialorder %v1274, 8.507059e+37
      %v1276 = vand.u32 %v1037, 2147483648
      %v1277 = vor.u32 1.1754944e-38, %v1276
      %v1278 = vsel %vm1275, %v1277, %v1273
      %v1279 = vmul.f32 1.0, %v1278
      %v1280 = vrcp.pop %v1038
      %v1281 = vmul.f32 %v1038, %v1280
      %v1282 = vsub.f32 1.0, %v1281
      %v1283 = vmul.f32 %v1280, %v1282
      %v1284 = vadd.f32 %v1280, %v1283
      %vm1285 = vweird.f32 %v1038
      %vm1286 = vweird.f32 %v1280
      %vm1287 = vmor %vm1285, %vm1286
      %v1288 = vsel %vm1287, %v1280, %v1284
      %v1289 = vand.u32 2147483647, %v1038
      %vm1290 = vcmp.eq.f32.partialorder %v1289, 8.507059e+37
      %v1291 = vand.u32 %v1038, 2147483648
      %v1292 = vor.u32 1.1754944e-38, %v1291
      %v1293 = vsel %vm1290, %v1292, %v1288
      %v1294 = vmul.f32 1.0, %v1293
      %v1295 = vrcp.pop %v1039
      %v1296 = vmul.f32 %v1039, %v1295
      %v1297 = vsub.f32 1.0, %v1296
      %v1298 = vmul.f32 %v1295, %v1297
      %v1299 = vadd.f32 %v1295, %v1298
      %vm1300 = vweird.f32 %v1039
      %vm1301 = vweird.f32 %v1295
      %vm1302 = vmor %vm1300, %vm1301
      %v1303 = vsel %vm1302, %v1295, %v1299
      %v1304 = vand.u32 2147483647, %v1039
      %vm1305 = vcmp.eq.f32.partialorder %v1304, 8.507059e+37
      %v1306 = vand.u32 %v1039, 2147483648
      %v1307 = vor.u32 1.1754944e-38, %v1306
      %v1308 = vsel %vm1305, %v1307, %v1303
      %v1309 = vmul.f32 1.0, %v1308
      %v1310 = vrcp.pop %v1040
      %v1311 = vmul.f32 %v1040, %v1310
      %v1312 = vsub.f32 1.0, %v1311
      %v1313 = vmul.f32 %v1310, %v1312
      %v1314 = vadd.f32 %v1310, %v1313
      %vm1315 = vweird.f32 %v1040
      %vm1316 = vweird.f32 %v1310
      %vm1317 = vmor %vm1315, %vm1316
      %v1318 = vsel %vm1317, %v1310, %v1314
      %v1319 = vand.u32 2147483647, %v1040
      %vm1320 = vcmp.eq.f32.partialorder %v1319, 8.507059e+37
      %v1321 = vand.u32 %v1040, 2147483648
      %v1322 = vor.u32 1.1754944e-38, %v1321
      %v1323 = vsel %vm1320, %v1322, %v1318
      %v1324 = vmul.f32 1.0, %v1323
      %v1325 = vrcp.pop %v1041
      %v1326 = vmul.f32 %v1041, %v1325
      %v1327 = vsub.f32 1.0, %v1326
      %v1328 = vmul.f32 %v1325, %v1327
      %v1329 = vadd.f32 %v1325, %v1328
      %vm1330 = vweird.f32 %v1041
      %vm1331 = vweird.f32 %v1325
      %vm1332 = vmor %vm1330, %vm1331
      %v1333 = vsel %vm1332, %v1325, %v1329
      %v1334 = vand.u32 2147483647, %v1041
      %vm1335 = vcmp.eq.f32.partialorder %v1334, 8.507059e+37
      %v1336 = vand.u32 %v1041, 2147483648
      %v1337 = vor.u32 1.1754944e-38, %v1336
      %v1338 = vsel %vm1335, %v1337, %v1333
      %v1339 = vmul.f32 1.0, %v1338
      %v1340 = vrcp.pop %v1042
      %v1341 = vmul.f32 %v1042, %v1340
      %v1342 = vsub.f32 1.0, %v1341
      %v1343 = vmul.f32 %v1340, %v1342
      %v1344 = vadd.f32 %v1340, %v1343
      %vm1345 = vweird.f32 %v1042
      %vm1346 = vweird.f32 %v1340
      %vm1347 = vmor %vm1345, %vm1346
      %v1348 = vsel %vm1347, %v1340, %v1344
      %v1349 = vand.u32 2147483647, %v1042
      %vm1350 = vcmp.eq.f32.partialorder %v1349, 8.507059e+37
      %v1351 = vand.u32 %v1042, 2147483648
      %v1352 = vor.u32 1.1754944e-38, %v1351
      %v1353 = vsel %vm1350, %v1352, %v1348
      %v1354 = vmul.f32 1.0, %v1353
      %v1355 = vrcp.pop %v1043
      %v1356 = vmul.f32 %v1043, %v1355
      %v1357 = vsub.f32 1.0, %v1356
      %v1358 = vmul.f32 %v1355, %v1357
      %v1359 = vadd.f32 %v1355, %v1358
      %vm1360 = vweird.f32 %v1043
      %vm1361 = vweird.f32 %v1355
      %vm1362 = vmor %vm1360, %vm1361
      %v1363 = vsel %vm1362, %v1355, %v1359
      %v1364 = vand.u32 2147483647, %v1043
      %vm1365 = vcmp.eq.f32.partialorder %v1364, 8.507059e+37
      %v1366 = vand.u32 %v1043, 2147483648
      %v1367 = vor.u32 1.1754944e-38, %v1366
      %v1368 = vsel %vm1365, %v1367, %v1363
      %v1369 = vmul.f32 1.0, %v1368
      %v1370 = vrcp.pop %v1044
      %v1371 = vmul.f32 %v1044, %v1370
      %v1372 = vsub.f32 1.0, %v1371
      %v1373 = vmul.f32 %v1370, %v1372
      %v1374 = vadd.f32 %v1370, %v1373
      %vm1375 = vweird.f32 %v1044
      %vm1376 = vweird.f32 %v1370
      %vm1377 = vmor %vm1375, %vm1376
      %v1378 = vsel %vm1377, %v1370, %v1374
      %v1379 = vand.u32 2147483647, %v1044
      %vm1380 = vcmp.eq.f32.partialorder %v1379, 8.507059e+37
      %v1381 = vand.u32 %v1044, 2147483648
      %v1382 = vor.u32 1.1754944e-38, %v1381
      %v1383 = vsel %vm1380, %v1382, %v1378
      %v1384 = vmul.f32 1.0, %v1383
      %v1385 = vrcp.pop %v1045
      %v1386 = vmul.f32 %v1045, %v1385
      %v1387 = vsub.f32 1.0, %v1386
      %v1388 = vmul.f32 %v1385, %v1387
      %v1389 = vadd.f32 %v1385, %v1388
      %vm1390 = vweird.f32 %v1045
      %vm1391 = vweird.f32 %v1385
      %vm1392 = vmor %vm1390, %vm1391
      %v1393 = vsel %vm1392, %v1385, %v1389
      %v1394 = vand.u32 2147483647, %v1045
      %vm1395 = vcmp.eq.f32.partialorder %v1394, 8.507059e+37
      %v1396 = vand.u32 %v1045, 2147483648
      %v1397 = vor.u32 1.1754944e-38, %v1396
      %v1398 = vsel %vm1395, %v1397, %v1393
      %v1399 = vmul.f32 1.0, %v1398
      %v1400 = vrcp.pop %v1046
      %v1401 = vmul.f32 %v1046, %v1400
      %v1402 = vsub.f32 1.0, %v1401
      %v1403 = vmul.f32 %v1400, %v1402
      %v1404 = vadd.f32 %v1400, %v1403
      %vm1405 = vweird.f32 %v1046
      %vm1406 = vweird.f32 %v1400
      %vm1407 = vmor %vm1405, %vm1406
      %v1408 = vsel %vm1407, %v1400, %v1404
      %v1409 = vand.u32 2147483647, %v1046
      %vm1410 = vcmp.eq.f32.partialorder %v1409, 8.507059e+37
      %v1411 = vand.u32 %v1046, 2147483648
      %v1412 = vor.u32 1.1754944e-38, %v1411
      %v1413 = vsel %vm1410, %v1412, %v1408
      %v1414 = vmul.f32 1.0, %v1413
      %v1415 = vrcp.pop %v1047
      %v1416 = vmul.f32 %v1047, %v1415
      %v1417 = vsub.f32 1.0, %v1416
      %v1418 = vmul.f32 %v1415, %v1417
      %v1419 = vadd.f32 %v1415, %v1418
      %vm1420 = vweird.f32 %v1047
      %vm1421 = vweird.f32 %v1415
      %vm1422 = vmor %vm1420, %vm1421
      %v1423 = vsel %vm1422, %v1415, %v1419
      %v1424 = vand.u32 2147483647, %v1047
      %vm1425 = vcmp.eq.f32.partialorder %v1424, 8.507059e+37
      %v1426 = vand.u32 %v1047, 2147483648
      %v1427 = vor.u32 1.1754944e-38, %v1426
      %v1428 = vsel %vm1425, %v1427, %v1423
      %v1429 = vmul.f32 1.0, %v1428
      %v1430 = vrcp.pop %v1048
      %v1431 = vmul.f32 %v1048, %v1430
      %v1432 = vsub.f32 1.0, %v1431
      %v1433 = vmul.f32 %v1430, %v1432
      %v1434 = vadd.f32 %v1430, %v1433
      %vm1435 = vweird.f32 %v1048
      %vm1436 = vweird.f32 %v1430
      %vm1437 = vmor %vm1435, %vm1436
      %v1438 = vsel %vm1437, %v1430, %v1434
      %v1439 = vand.u32 2147483647, %v1048
      %vm1440 = vcmp.eq.f32.partialorder %v1439, 8.507059e+37
      %v1441 = vand.u32 %v1048, 2147483648
      %v1442 = vor.u32 1.1754944e-38, %v1441
      %v1443 = vsel %vm1440, %v1442, %v1438
      %v1444 = vmul.f32 1.0, %v1443
      %v1445 = vrcp.pop %v1049
      %v1446 = vmul.f32 %v1049, %v1445
      %v1447 = vsub.f32 1.0, %v1446
      %v1448 = vmul.f32 %v1445, %v1447
      %v1449 = vadd.f32 %v1445, %v1448
      %vm1450 = vweird.f32 %v1049
      %vm1451 = vweird.f32 %v1445
      %vm1452 = vmor %vm1450, %vm1451
      %v1453 = vsel %vm1452, %v1445, %v1449
      %v1454 = vand.u32 2147483647, %v1049
      %vm1455 = vcmp.eq.f32.partialorder %v1454, 8.507059e+37
      %v1456 = vand.u32 %v1049, 2147483648
      %v1457 = vor.u32 1.1754944e-38, %v1456
      %v1458 = vsel %vm1455, %v1457, %v1453
      %v1459 = vmul.f32 1.0, %v1458
      %v1460 = vrcp.pop %v1050
      %v1461 = vmul.f32 %v1050, %v1460
      %v1462 = vsub.f32 1.0, %v1461
      %v1463 = vmul.f32 %v1460, %v1462
      %v1464 = vadd.f32 %v1460, %v1463
      %vm1465 = vweird.f32 %v1050
      %vm1466 = vweird.f32 %v1460
      %vm1467 = vmor %vm1465, %vm1466
      %v1468 = vsel %vm1467, %v1460, %v1464
      %v1469 = vand.u32 2147483647, %v1050
      %vm1470 = vcmp.eq.f32.partialorder %v1469, 8.507059e+37
      %v1471 = vand.u32 %v1050, 2147483648
      %v1472 = vor.u32 1.1754944e-38, %v1471
      %v1473 = vsel %vm1470, %v1472, %v1468
      %v1474 = vmul.f32 1.0, %v1473
      %v1475 = vrcp.pop %v1051
      %v1476 = vmul.f32 %v1051, %v1475
      %v1477 = vsub.f32 1.0, %v1476
      %v1478 = vmul.f32 %v1475, %v1477
      %v1479 = vadd.f32 %v1475, %v1478
      %vm1480 = vweird.f32 %v1051
      %vm1481 = vweird.f32 %v1475
      %vm1482 = vmor %vm1480, %vm1481
      %v1483 = vsel %vm1482, %v1475, %v1479
      %v1484 = vand.u32 2147483647, %v1051
      %vm1485 = vcmp.eq.f32.partialorder %v1484, 8.507059e+37
      %v1486 = vand.u32 %v1051, 2147483648
      %v1487 = vor.u32 1.1754944e-38, %v1486
      %v1488 = vsel %vm1485, %v1487, %v1483
      %v1489 = vmul.f32 1.0, %v1488
      %v1490 = vrcp.pop %v1052
      %v1491 = vmul.f32 %v1052, %v1490
      %v1492 = vsub.f32 1.0, %v1491
      %v1493 = vmul.f32 %v1490, %v1492
      %v1494 = vadd.f32 %v1490, %v1493
      %vm1495 = vweird.f32 %v1052
      %vm1496 = vweird.f32 %v1490
      %vm1497 = vmor %vm1495, %vm1496
      %v1498 = vsel %vm1497, %v1490, %v1494
      %v1499 = vand.u32 2147483647, %v1052
      %vm1500 = vcmp.eq.f32.partialorder %v1499, 8.507059e+37
      %v1501 = vand.u32 %v1052, 2147483648
      %v1502 = vor.u32 1.1754944e-38, %v1501
      %v1503 = vsel %vm1500, %v1502, %v1498
      %v1504 = vmul.f32 1.0, %v1503
      %v1505 = vrcp.pop %v1053
      %v1506 = vmul.f32 %v1053, %v1505
      %v1507 = vsub.f32 1.0, %v1506
      %v1508 = vmul.f32 %v1505, %v1507
      %v1509 = vadd.f32 %v1505, %v1508
      %vm1510 = vweird.f32 %v1053
      %vm1511 = vweird.f32 %v1505
      %vm1512 = vmor %vm1510, %vm1511
      %v1513 = vsel %vm1512, %v1505, %v1509
      %v1514 = vand.u32 2147483647, %v1053
      %vm1515 = vcmp.eq.f32.partialorder %v1514, 8.507059e+37
      %v1516 = vand.u32 %v1053, 2147483648
      %v1517 = vor.u32 1.1754944e-38, %v1516
      %v1518 = vsel %vm1515, %v1517, %v1513
      %v1519 = vmul.f32 1.0, %v1518
      %v1520 = vrcp.pop %v1054
      %v1521 = vmul.f32 %v1054, %v1520
      %v1522 = vsub.f32 1.0, %v1521
      %v1523 = vmul.f32 %v1520, %v1522
      %v1524 = vadd.f32 %v1520, %v1523
      %vm1525 = vweird.f32 %v1054
      %vm1526 = vweird.f32 %v1520
      %vm1527 = vmor %vm1525, %vm1526
      %v1528 = vsel %vm1527, %v1520, %v1524
      %v1529 = vand.u32 2147483647, %v1054
      %vm1530 = vcmp.eq.f32.partialorder %v1529, 8.507059e+37
      %v1531 = vand.u32 %v1054, 2147483648
      %v1532 = vor.u32 1.1754944e-38, %v1531
      %v1533 = vsel %vm1530, %v1532, %v1528
      %v1534 = vmul.f32 1.0, %v1533
      %v1535 = vperm.slane %v161, 4
      %vm1537 = vcmask 1043456
      %v1538 = vrot.slane %v160, 4
      %v1539 = vrot.slane %v161, 4
      %v1540 = vsel %vm1537, %v1538, %v1539
      %vm1542 = vcmask 64512
      %v1544 = vsel %vm1542, %v1069, 0
      %v1547 = vsel %vm1542, %v1084, 0
      %v1550 = vsel %vm1542, %v1099, 0
      %v1553 = vsel %vm1542, %v1114, 0
      %v1556 = vsel %vm1542, %v1129, 0
      %v1559 = vsel %vm1542, %v1144, 0
      %v1562 = vsel %vm1542, %v1159, 0
      %v1565 = vsel %vm1542, %v1174, 0
      %v1568 = vsel %vm1542, %v1189, 0
      %v1571 = vsel %vm1542, %v1204, 0
      %v1574 = vsel %vm1542, %v1219, 0
      %v1577 = vsel %vm1542, %v1234, 0
      %v1580 = vsel %vm1542, %v1249, 0
      %v1583 = vsel %vm1542, %v1264, 0
      %v1586 = vsel %vm1542, %v1279, 0
      %v1589 = vsel %vm1542, %v1294, 0
      %v1592 = vsel %vm1542, %v1309, 0
      %v1595 = vsel %vm1542, %v1324, 0
      %v1598 = vsel %vm1542, %v1339, 0
      %v1601 = vsel %vm1542, %v1354, 0
      %v1604 = vsel %vm1542, %v1369, 0
      %v1607 = vsel %vm1542, %v1384, 0
      %v1610 = vsel %vm1542, %v1399, 0
      %v1613 = vsel %vm1542, %v1414, 0
      %v1616 = vsel %vm1542, %v1429, 0
      %v1619 = vsel %vm1542, %v1444, 0
      %v1622 = vsel %vm1542, %v1459, 0
      %v1625 = vsel %vm1542, %v1474, 0
      %v1628 = vsel %vm1542, %v1489, 0
      %v1631 = vsel %vm1542, %v1504, 0
      %v1634 = vsel %vm1542, %v1519, 0
      %v1637 = vsel %vm1542, %v1534, 0
      %1639 = vmatpush.msra.mxu0 0.0
      %1640 = vmatpush.msra.mxu0 0.0
      %1641 = vmatpush.msra.mxu0 0.0
      %1642 = vmatpush.msra.mxu0 0.0
      %1643 = vmatpush.msra.mxu0 0.0
      %1644 = vmatpush.msra.mxu0 0.0
      %1645 = vmatpush.msra.mxu0 0.0
      %1646 = vmatpush.msra.mxu0 0.0
      %1647 = vmatpush.msra.mxu0 0.0
      %1648 = vmatpush.msra.mxu0 0.0
      %1649 = vmatpush.msra.mxu0 0.0
      %1650 = vmatpush.msra.mxu0 0.0
      %1651 = vmatpush.msra.mxu0 0.0
      %1652 = vmatpush.msra.mxu0 0.0
      %1653 = vmatpush.msra.mxu0 0.0
      %1654 = vmatpush.msra.mxu0 %v1540
      %1655 = vmatmul.f32.gmra.mxu0 %v1544
      %v1656 = vpop.f32.mrf.mxu0
      %v1657 = vadd.f32 %v1535, %v1656
      %1658 = vmatmul.f32.gmra.mxu0 %v1547
      %v1659 = vpop.f32.mrf.mxu0
      %v1660 = vadd.f32 %v1535, %v1659
      %1661 = vmatmul.f32.gmra.mxu0 %v1550
      %v1662 = vpop.f32.mrf.mxu0
      %v1663 = vadd.f32 %v1535, %v1662
      %1664 = vmatmul.f32.gmra.mxu0 %v1553
      %v1665 = vpop.f32.mrf.mxu0
      %v1666 = vadd.f32 %v1535, %v1665
      %1667 = vmatmul.f32.gmra.mxu0 %v1556
      %v1668 = vpop.f32.mrf.mxu0
      %v1669 = vadd.f32 %v1535, %v1668
      %1670 = vmatmul.f32.gmra.mxu0 %v1559
      %v1671 = vpop.f32.mrf.mxu0
      %v1672 = vadd.f32 %v1535, %v1671
      %1673 = vmatmul.f32.gmra.mxu0 %v1562
      %v1674 = vpop.f32.mrf.mxu0
      %v1675 = vadd.f32 %v1535, %v1674
      %1676 = vmatmul.f32.gmra.mxu0 %v1565
      %v1677 = vpop.f32.mrf.mxu0
      %v1678 = vadd.f32 %v1535, %v1677
      %1679 = vmatmul.f32.gmra.mxu0 %v1568
      %v1680 = vpop.f32.mrf.mxu0
      %v1681 = vadd.f32 %v1535, %v1680
      %1682 = vmatmul.f32.gmra.mxu0 %v1571
      %v1683 = vpop.f32.mrf.mxu0
      %v1684 = vadd.f32 %v1535, %v1683
      %1685 = vmatmul.f32.gmra.mxu0 %v1574
      %v1686 = vpop.f32.mrf.mxu0
      %v1687 = vadd.f32 %v1535, %v1686
      %1688 = vmatmul.f32.gmra.mxu0 %v1577
      %v1689 = vpop.f32.mrf.mxu0
      %v1690 = vadd.f32 %v1535, %v1689
      %1691 = vmatmul.f32.gmra.mxu0 %v1580
      %v1692 = vpop.f32.mrf.mxu0
      %v1693 = vadd.f32 %v1535, %v1692
      %1694 = vmatmul.f32.gmra.mxu0 %v1583
      %v1695 = vpop.f32.mrf.mxu0
      %v1696 = vadd.f32 %v1535, %v1695
      %1697 = vmatmul.f32.gmra.mxu0 %v1586
      %v1698 = vpop.f32.mrf.mxu0
      %v1699 = vadd.f32 %v1535, %v1698
      %1700 = vmatmul.f32.gmra.mxu0 %v1589
      %v1701 = vpop.f32.mrf.mxu0
      %v1702 = vadd.f32 %v1535, %v1701
      %1703 = vmatmul.f32.gmra.mxu0 %v1592
      %v1704 = vpop.f32.mrf.mxu0
      %v1705 = vadd.f32 %v1535, %v1704
      %1706 = vmatmul.f32.gmra.mxu0 %v1595
      %v1707 = vpop.f32.mrf.mxu0
      %v1708 = vadd.f32 %v1535, %v1707
      %1709 = vmatmul.f32.gmra.mxu0 %v1598
      %v1710 = vpop.f32.mrf.mxu0
      %v1711 = vadd.f32 %v1535, %v1710
      %1712 = vmatmul.f32.gmra.mxu0 %v1601
      %v1713 = vpop.f32.mrf.mxu0
      %v1714 = vadd.f32 %v1535, %v1713
      %1715 = vmatmul.f32.gmra.mxu0 %v1604
      %v1716 = vpop.f32.mrf.mxu0
      %v1717 = vadd.f32 %v1535, %v1716
      %1718 = vmatmul.f32.gmra.mxu0 %v1607
      %v1719 = vpop.f32.mrf.mxu0
      %v1720 = vadd.f32 %v1535, %v1719
      %1721 = vmatmul.f32.gmra.mxu0 %v1610
      %v1722 = vpop.f32.mrf.mxu0
      %v1723 = vadd.f32 %v1535, %v1722
      %1724 = vmatmul.f32.gmra.mxu0 %v1613
      %v1725 = vpop.f32.mrf.mxu0
      %v1726 = vadd.f32 %v1535, %v1725
      %1727 = vmatmul.f32.gmra.mxu0 %v1616
      %v1728 = vpop.f32.mrf.mxu0
      %v1729 = vadd.f32 %v1535, %v1728
      %1730 = vmatmul.f32.gmra.mxu0 %v1619
      %v1731 = vpop.f32.mrf.mxu0
      %v1732 = vadd.f32 %v1535, %v1731
      %1733 = vmatmul.f32.gmra.mxu0 %v1622
      %v1734 = vpop.f32.mrf.mxu0
      %v1735 = vadd.f32 %v1535, %v1734
      %1736 = vmatmul.f32.gmra.mxu0 %v1625
      %v1737 = vpop.f32.mrf.mxu0
      %v1738 = vadd.f32 %v1535, %v1737
      %1739 = vmatmul.f32.gmra.mxu0 %v1628
      %v1740 = vpop.f32.mrf.mxu0
      %v1741 = vadd.f32 %v1535, %v1740
      %1742 = vmatmul.f32.gmra.mxu0 %v1631
      %v1743 = vpop.f32.mrf.mxu0
      %v1744 = vadd.f32 %v1535, %v1743
      %1745 = vmatmul.f32.gmra.mxu0 %v1634
      %v1746 = vpop.f32.mrf.mxu0
      %v1747 = vadd.f32 %v1535, %v1746
      %1748 = vmatmul.f32.gmra.mxu0 %v1637
      %v1749 = vpop.f32.mrf.mxu0
      %v1750 = vadd.f32 %v1535, %v1749
      %1751 = vdwg.mxu0
      %vm1752 = vcmask 15360
      %1753 = vst.msk [vmem:[%s145] sm:$0xff] %vm1752, %v1657
      %1754 = vst.msk [vmem:[%s145 + $0x8] sm:$0xff] %vm1752, %v1660
      %1755 = vst.msk [vmem:[%s145 + $0x10] sm:$0xff] %vm1752, %v1663
      %1756 = vst.msk [vmem:[%s145 + $0x18] sm:$0xff] %vm1752, %v1666
      %1757 = vst.msk [vmem:[%s145 + $0x20] sm:$0xff] %vm1752, %v1669
      %1758 = vst.msk [vmem:[%s145 + $0x28] sm:$0xff] %vm1752, %v1672
      %1759 = vst.msk [vmem:[%s145 + $0x30] sm:$0xff] %vm1752, %v1675
      %1760 = vst.msk [vmem:[%s145 + $0x38] sm:$0xff] %vm1752, %v1678
      %1761 = vst.msk [vmem:[%s145 + $0x40] sm:$0xff] %vm1752, %v1681
      %1762 = vst.msk [vmem:[%s145 + $0x48] sm:$0xff] %vm1752, %v1684
      %1763 = vst.msk [vmem:[%s145 + $0x50] sm:$0xff] %vm1752, %v1687
      %1764 = vst.msk [vmem:[%s145 + $0x58] sm:$0xff] %vm1752, %v1690
      %1765 = vst.msk [vmem:[%s145 + $0x60] sm:$0xff] %vm1752, %v1693
      %1766 = vst.msk [vmem:[%s145 + $0x68] sm:$0xff] %vm1752, %v1696
      %1767 = vst.msk [vmem:[%s145 + $0x70] sm:$0xff] %vm1752, %v1699
      %1768 = vst.msk [vmem:[%s145 + $0x78] sm:$0xff] %vm1752, %v1702
      %1769 = vst.msk [vmem:[%s145 + $0x80] sm:$0xff] %vm1752, %v1705
      %1770 = vst.msk [vmem:[%s145 + $0x88] sm:$0xff] %vm1752, %v1708
      %1771 = vst.msk [vmem:[%s145 + $0x90] sm:$0xff] %vm1752, %v1711
      %1772 = vst.msk [vmem:[%s145 + $0x98] sm:$0xff] %vm1752, %v1714
      %1773 = vst.msk [vmem:[%s145 + $0xa0] sm:$0xff] %vm1752, %v1717
      %1774 = vst.msk [vmem:[%s145 + $0xa8] sm:$0xff] %vm1752, %v1720
      %1775 = vst.msk [vmem:[%s145 + $0xb0] sm:$0xff] %vm1752, %v1723
      %1776 = vst.msk [vmem:[%s145 + $0xb8] sm:$0xff] %vm1752, %v1726
      %1777 = vst.msk [vmem:[%s145 + $0xc0] sm:$0xff] %vm1752, %v1729
      %1778 = vst.msk [vmem:[%s145 + $0xc8] sm:$0xff] %vm1752, %v1732
      %1779 = vst.msk [vmem:[%s145 + $0xd0] sm:$0xff] %vm1752, %v1735
      %1780 = vst.msk [vmem:[%s145 + $0xd8] sm:$0xff] %vm1752, %v1738
      %1781 = vst.msk [vmem:[%s145 + $0xe0] sm:$0xff] %vm1752, %v1741
      %1782 = vst.msk [vmem:[%s145 + $0xe8] sm:$0xff] %vm1752, %v1744
      %1783 = vst.msk [vmem:[%s145 + $0xf0] sm:$0xff] %vm1752, %v1747
      %1784 = vst.msk [vmem:[%s145 + $0xf8] sm:$0xff] %vm1752, %v1750
      %s1785 = smul.u32 32, %s13
      %p1786 = scmp.lt.s32.totalorder %s1785, 63
      %s1787 = scalar_select %p1786, %s1785, 63
      %s1788 = smul.addr %s1787, 8
      %s1789 = scalar_lea.vmem %s2, %s1788
      // Predicated region
      $region29: #{tpu_custom_call.1} parent=27 // pred_check
        %p1790 = pneg %p78
      $region30: #{tpu_custom_call.1} parent=27 // pred_check_branch
        %1792 = sbr.rel (%p1790) target = $region32
      $region31: #{tpu_custom_call.1} parent=27 // pred_region
        %s1793 = smul.u32 32, %s13
      $region32: #{tpu_custom_call.1} parent=27 // pred_fallthru
        _
    $region28: #{tpu_custom_call.1} parent=5 // pred_fallthru
      _
    %p1794 = scmp.le.s32.totalorder 2, %s8
    // Predicated region
    $region33: #{tpu_custom_call.1} parent=5 // pred_check
      %p1795 = pneg %p1794
    $region34: #{tpu_custom_call.1} parent=5 // pred_check_branch
      %1797 = sbr.rel (%p1795) target = $region36
    $region35: #{tpu_custom_call.1} parent=5 // pred_region
      %s1798 = ssub.s32 %s8, 2
      // Predicated region
      $region37: #{tpu_custom_call.1} parent=35 // pred_check
        %p1799 = pneg %p84
      $region38: #{tpu_custom_call.1} parent=35 // pred_check_branch
        %1801 = sbr.rel (%p1799) target = $region40
      $region39: #{tpu_custom_call.1} parent=35 // pred_region
        %s1802 = smul.u32 32, %s14
        %p1803 = scmp.lt.s32.totalorder %s1802, 63
        %s1804 = scalar_select %p1803, %s1802, 63
        %s1805 = smul.addr %s1804, 8
        %s1806 = scalar_lea.vmem %s2, %s1805
      $region40: #{tpu_custom_call.1} parent=35 // pred_fallthru
        _
    $region36: #{tpu_custom_call.1} parent=5 // pred_fallthru
      _
  $region6: #{tpu_custom_call.1} parent=0 // loop_footer
    %s12 = sadd.s32 1, %s8
  $region7: #{tpu_custom_call.1} parent=0 // loop_footer_branch
    %7 = sbr.rel target = $region3
  $region8: #{tpu_custom_call.1} parent=0 // loop_exit
    _

</llo_original>
